<compile_context>
chip_gen: v7x
topology: tpu7x:2x2x1
jax: 0.10.0
libtpu: 0.0.40
codegen_flags: <defaults>
</compile_context>

<pallas_src>
import math
from functools import partial

import jax
import jax.numpy as jnp
from jax.experimental import pallas as pl
from jax.experimental.pallas import tpu as pltpu


def _lstm_kernel(x_ref, w_ref, u_ref, b_ref,
                 hseq_ref, h_out_ref, c_out_ref,
                 *, bt, S, H, group, matmul_dtype):
    """One batch-block of the whole-sequence LSTM recurrence.

    x_ref:    (bt*S, I)   inputs for this batch block (row = b_local*S + t)
    w_ref:    (I, 4H)     stacked [w_i | w_f | w_c | w_o]
    u_ref:    (H, 4H)     stacked [u_i | u_f | u_c | u_o]
    b_ref:    (1, 4H)     stacked biases
    hseq_ref: (bt, S*H)   lane-dense hidden_seq slab (cols t*H:(t+1)*H == h_t)
    h_out_ref:(bt, H)     final h_t
    c_out_ref:(bt, H)     final c_t
    """
    H4 = 4 * H
    mm = matmul_dtype

    x2 = x_ref[...].astype(mm)                    # (bt*S, I)
    w = w_ref[...].astype(mm)                     # (I, 4H)
    u = u_ref[...].astype(mm)                     # (H, 4H)  hoisted cast
    b = b_ref[...].astype(jnp.float32)            # (1, 4H)

    # Hoisted input projection for every (b, t) of this block: one MXU pass,
    # no recurrent dependence.  Accumulate in f32.
    xw = jnp.dot(x2, w, preferred_element_type=jnp.float32) + b    # (bt*S, 4H)
    xw = xw.reshape(bt, S, H4)                                      # layout no-op

    h = jnp.zeros((bt, H), jnp.float32)
    c = jnp.zeros((bt, H), jnp.float32)

    n_groups = S // group
    for g in range(n_groups):
        hs = []
        for j in range(group):
            t = g * group + j
            # Recurrent projection; only this dot sits on the serial chain.
            gates = xw[:, t, :] + jnp.dot(h.astype(mm), u,
                                          preferred_element_type=jnp.float32)
            gates = jax.nn.sigmoid(gates)          # one full-lane (bt,4H) EUP pass
            i_t = gates[:, 0 * H:1 * H]
            f_t = gates[:, 1 * H:2 * H]
            g_t = gates[:, 2 * H:3 * H]            # sigmoid (matches reference)
            o_t = gates[:, 3 * H:4 * H]

            # Module's (nonstandard) update equations, verbatim, in f32:
            c = f_t + c + i_t * g_t
            h = o_t + jnp.tanh(c)
            hs.append(h)

        # Store `group` timesteps at once: group*H lanes (128 when possible)
        # -> unmasked full-lane stores on the idle vst slot, and only `group`
        # hidden states are ever live at once (not S).
        blk = hs[0] if group == 1 else jnp.concatenate(hs, axis=1)
        hseq_ref[:, g * group * H:(g + 1) * group * H] = blk.astype(hseq_ref.dtype)

    # Final state written exactly once.
    h_out_ref[...] = h.astype(h_out_ref.dtype)
    c_out_ref[...] = c.astype(c_out_ref.dtype)


def _pick_batch_tile(B):
    """Batch tile: whole batch if small, else a sublane-friendly divisor."""
    if B <= 8:
        return B
    for bt in (32, 16, 8):
        if B % bt == 0:
            return bt
    return B


def custom_lstm_pallas(x, w, u, b, *, batch_tile=None, use_bf16_matmul=False):
    """x: (B, S, I). w: (I, 4H), u: (H, 4H), b: (4H,).

    Returns (h_t, c_t, hidden_seq) with shapes (B, H), (B, H), (B, S, H).
    """
    B, S, I = x.shape
    H4 = w.shape[1]
    H = H4 // 4

    bt = batch_tile if batch_tile is not None else _pick_batch_tile(B)
    assert B % bt == 0, "batch_tile must divide batch"
    n_b = B // bt

    # Timestep grouping so each hseq store is a multiple of 128 lanes.
    if H % 128 == 0:
        group = 1                       # already lane-aligned per step
    elif 128 % H == 0 and S % (128 // H) == 0:
        group = 128 // H
    else:
        group = 1

    x2d = x.reshape(B * S, I)           # free row-major view (row = b*S + t)
    b2d = b.reshape(1, H4)

    mm = jnp.bfloat16 if use_bf16_matmul else jnp.float32

    # Explicit VMEM budget: double-buffered I/O blocks + weights + f32 xw
    # temporary, with margin; clamped to the v7x physical ceiling (64 MiB).
    isz = jnp.dtype(x.dtype).itemsize
    block_bytes = bt * S * I * isz + bt * S * H * isz + 2 * bt * H * isz
    weight_bytes = (I * H4 + H * H4 + H4) * isz
    temp_bytes = bt * S * H4 * 4
    vmem_bytes = 2 * block_bytes + weight_bytes + temp_bytes + (4 << 20)
    vmem_bytes = int(min(max(vmem_bytes, 8 << 20), 64 << 20))

    hseq_flat, h_t, c_t = pl.pallas_call(
        partial(_lstm_kernel, bt=bt, S=S, H=H, group=group, matmul_dtype=mm),
        out_shape=(
            jax.ShapeDtypeStruct((B, S * H), x.dtype),   # lane-dense slab
            jax.ShapeDtypeStruct((B, H), x.dtype),
            jax.ShapeDtypeStruct((B, H), x.dtype),
        ),
        grid=(n_b,),
        in_specs=[
            pl.BlockSpec((bt * S, I), lambda nb: (nb, 0)),   # x block
            pl.BlockSpec((I, H4), lambda nb: (0, 0)),        # W (replicated)
            pl.BlockSpec((H, H4), lambda nb: (0, 0)),        # U (replicated)
            pl.BlockSpec((1, H4), lambda nb: (0, 0)),        # bias
        ],
        out_specs=(
            pl.BlockSpec((bt, S * H), lambda nb: (nb, 0)),
            pl.BlockSpec((bt, H), lambda nb: (nb, 0)),
            pl.BlockSpec((bt, H), lambda nb: (nb, 0)),
        ),
        compiler_params=pltpu.CompilerParams(
            dimension_semantics=("parallel",),   # batch blocks are independent
            vmem_limit_bytes=vmem_bytes,
        ),
    )(x2d, w, u, b2d)

    hidden_seq = hseq_flat.reshape(B, S, H)      # free reshape back to (B, S, H)
    return h_t, c_t, hidden_seq


def custom_lstm_ref(x, w, u, b):
    """Pure-JAX reference matching the PyTorch forward exactly."""
    B, S, I = x.shape
    H = w.shape[1] // 4
    w_i, w_f, w_c, w_o = jnp.split(w, 4, axis=1)
    u_i, u_f, u_c, u_o = jnp.split(u, 4, axis=1)
    b_i, b_f, b_c, b_o = jnp.split(b, 4)
    h_t = jnp.zeros((B, H), x.dtype)
    c_t = jnp.zeros((B, H), x.dtype)
    seq = []
    for t in range(S):
        x_t = x[:, t, :]
        i_t = jax.nn.sigmoid(x_t @ w_i + h_t @ u_i + b_i)
        f_t = jax.nn.sigmoid(x_t @ w_f + h_t @ u_f + b_f)
        g_t = jax.nn.sigmoid(x_t @ w_c + h_t @ u_c + b_c)
        o_t = jax.nn.sigmoid(x_t @ w_o + h_t @ u_o + b_o)
        c_t = f_t + c_t + i_t * g_t
        h_t = o_t + jnp.tanh(c_t)
        seq.append(h_t)
    return h_t, c_t, jnp.stack(seq, axis=1)


if __name__ == "__main__":
    # Small shapes consistent with the module: batch=2, seq=8, input=4, hidden=32.
    input_size, hidden_size, batch_size, seq_len = 4, 32, 2, 8

    key = jax.random.PRNGKey(0)
    k_x, k_w, k_u, k_b = jax.random.split(key, 4)

    stdv = 1.0 / math.sqrt(hidden_size)
    # Stacked parameters: [i | f | c | o] along the last axis.
    w = jax.random.uniform(k_w, (input_size, 4 * hidden_size),
                           minval=-stdv, maxval=stdv, dtype=jnp.float32)
    u = jax.random.uniform(k_u, (hidden_size, 4 * hidden_size),
                           minval=-stdv, maxval=stdv, dtype=jnp.float32)
    b = jax.random.uniform(k_b, (4 * hidden_size,),
                           minval=-stdv, maxval=stdv, dtype=jnp.float32)

    x = jax.random.normal(k_x, (batch_size, seq_len, input_size), dtype=jnp.float32)

    # f32 matmul path (exact vs reference).
    h_t, c_t, hidden_seq = custom_lstm_pallas(x, w, u, b)
    jax.block_until_ready((h_t, c_t, hidden_seq))

    h_ref, c_ref, seq_ref = custom_lstm_ref(x, w, u, b)
    assert hidden_seq.shape == (batch_size, seq_len, hidden_size)
    assert jnp.allclose(h_t, h_ref, atol=1e-5, rtol=1e-5)
    assert jnp.allclose(c_t, c_ref, atol=1e-5, rtol=1e-5)
    assert jnp.allclose(hidden_seq, seq_ref, atol=1e-5, rtol=1e-5)

    # bf16 matmul-input path (v6e/v7x MXU-friendly); state/EUP stay f32.
    h_b, c_b, seq_b = custom_lstm_pallas(x, w, u, b, use_bf16_matmul=True)
    jax.block_until_ready((h_b, c_b, seq_b))
    assert jnp.allclose(h_b, h_ref, atol=5e-2, rtol=5e-2)
    assert jnp.allclose(c_b, c_ref, atol=5e-2, rtol=5e-2)
    assert jnp.allclose(seq_b, seq_ref, atol=5e-2, rtol=5e-2)

    print("KERNEL_OK")
</pallas_src>

<mosaic_0001>
module attributes {stable_mosaic.version = 11 : i64} {
  func.func @_lstm_kernel(%arg0: i32, %arg1: memref<16x4xf32, #tpu.memory_space<vmem>>, %arg2: memref<4x128xf32, #tpu.memory_space<vmem>>, %arg3: memref<32x128xf32, #tpu.memory_space<vmem>>, %arg4: memref<1x128xf32, #tpu.memory_space<vmem>>, %arg5: memref<2x256xf32, #tpu.memory_space<vmem>>, %arg6: memref<2x32xf32, #tpu.memory_space<vmem>>, %arg7: memref<2x32xf32, #tpu.memory_space<vmem>>) attributes {dimension_semantics = [#tpu.dimension_semantics<parallel>], iteration_bounds = array<i64: 1>, scalar_prefetch = 0 : i64, scratch_operands = 0 : i64, tpu.core_type = #tpu.core_type<tc>, window_params = [{transform_indices = @transform_0, window_bounds = array<i64: 16, 4>}, {pipeline_mode = #tpu.pipeline_mode<synchronous>, transform_indices = @transform_1, window_bounds = array<i64: 4, 128>}, {pipeline_mode = #tpu.pipeline_mode<synchronous>, transform_indices = @transform_2, window_bounds = array<i64: 32, 128>}, {pipeline_mode = #tpu.pipeline_mode<synchronous>, transform_indices = @transform_3, window_bounds = array<i64: 1, 128>}, {transform_indices = @transform_4, window_bounds = array<i64: 2, 256>}, {transform_indices = @transform_5, window_bounds = array<i64: 2, 32>}, {transform_indices = @transform_6, window_bounds = array<i64: 2, 32>}]} {
    %c0 = arith.constant 0 : index
    %c0_0 = arith.constant 0 : index
    %0 = vector.load %arg1[%c0, %c0_0] : memref<16x4xf32, #tpu.memory_space<vmem>>, vector<16x4xf32>
    %c0_1 = arith.constant 0 : index
    %c0_2 = arith.constant 0 : index
    %1 = vector.load %arg2[%c0_1, %c0_2] : memref<4x128xf32, #tpu.memory_space<vmem>>, vector<4x128xf32>
    %c0_3 = arith.constant 0 : index
    %c0_4 = arith.constant 0 : index
    %2 = vector.load %arg3[%c0_3, %c0_4] : memref<32x128xf32, #tpu.memory_space<vmem>>, vector<32x128xf32>
    %c0_5 = arith.constant 0 : index
    %c0_6 = arith.constant 0 : index
    %3 = vector.load %arg4[%c0_5, %c0_6] : memref<1x128xf32, #tpu.memory_space<vmem>>, vector<1x128xf32>
    %cst = arith.constant dense<0.000000e+00> : vector<16x128xf32>
    %4 = tpu.matmul %0, %1, %cst {dimension_numbers = #tpu.dot_dimension_numbers<[1], [0], [0], [1], [0, 0, 1, 1], [], []>} : vector<16x4xf32>, vector<4x128xf32>, vector<16x128xf32> -> vector<16x128xf32>
    %5 = vector.broadcast %3 : vector<1x128xf32> to vector<16x128xf32>
    %6 = arith.addf %4, %5 : vector<16x128xf32>
    %7 = vector.shape_cast %6 : vector<16x128xf32> to vector<2x8x128xf32>
    %cst_7 = arith.constant 0.000000e+00 : f32
    %8 = vector.broadcast %cst_7 : f32 to vector<2x32xf32>
    %cst_8 = arith.constant 0.000000e+00 : f32
    %9 = vector.broadcast %cst_8 : f32 to vector<2x32xf32>
    %10 = vector.extract_strided_slice %7 {offsets = [0, 0, 0], sizes = [2, 1, 128], strides = [1, 1, 1]} : vector<2x8x128xf32> to vector<2x1x128xf32>
    %11 = vector.shape_cast %10 : vector<2x1x128xf32> to vector<2x128xf32>
    %cst_9 = arith.constant dense<0.000000e+00> : vector<2x128xf32>
    %12 = tpu.matmul %8, %2, %cst_9 {dimension_numbers = #tpu.dot_dimension_numbers<[1], [0], [0], [1], [0, 0, 1, 1], [], []>} : vector<2x32xf32>, vector<32x128xf32>, vector<2x128xf32> -> vector<2x128xf32>
    %13 = arith.addf %11, %12 : vector<2x128xf32>
    %14 = arith.negf %13 : vector<2x128xf32>
    %15 = math.exp %14 : vector<2x128xf32>
    %cst_10 = arith.constant 1.000000e+00 : f32
    %16 = vector.broadcast %cst_10 : f32 to vector<2x128xf32>
    %17 = arith.addf %16, %15 : vector<2x128xf32>
    %18 = arith.divf %16, %17 : vector<2x128xf32>
    %19 = vector.extract_strided_slice %18 {offsets = [0, 0], sizes = [2, 32], strides = [1, 1]} : vector<2x128xf32> to vector<2x32xf32>
    %20 = vector.extract_strided_slice %18 {offsets = [0, 32], sizes = [2, 32], strides = [1, 1]} : vector<2x128xf32> to vector<2x32xf32>
    %21 = vector.extract_strided_slice %18 {offsets = [0, 64], sizes = [2, 32], strides = [1, 1]} : vector<2x128xf32> to vector<2x32xf32>
    %22 = vector.extract_strided_slice %18 {offsets = [0, 96], sizes = [2, 32], strides = [1, 1]} : vector<2x128xf32> to vector<2x32xf32>
    %23 = arith.addf %20, %9 : vector<2x32xf32>
    %24 = arith.mulf %19, %21 : vector<2x32xf32>
    %25 = arith.addf %23, %24 : vector<2x32xf32>
    %26 = math.tanh %25 : vector<2x32xf32>
    %27 = arith.addf %22, %26 : vector<2x32xf32>
    %28 = vector.extract_strided_slice %7 {offsets = [0, 1, 0], sizes = [2, 1, 128], strides = [1, 1, 1]} : vector<2x8x128xf32> to vector<2x1x128xf32>
    %29 = vector.shape_cast %28 : vector<2x1x128xf32> to vector<2x128xf32>
    %cst_11 = arith.constant dense<0.000000e+00> : vector<2x128xf32>
    %30 = tpu.matmul %27, %2, %cst_11 {dimension_numbers = #tpu.dot_dimension_numbers<[1], [0], [0], [1], [0, 0, 1, 1], [], []>} : vector<2x32xf32>, vector<32x128xf32>, vector<2x128xf32> -> vector<2x128xf32>
    %31 = arith.addf %29, %30 : vector<2x128xf32>
    %32 = arith.negf %31 : vector<2x128xf32>
    %33 = math.exp %32 : vector<2x128xf32>
    %cst_12 = arith.constant 1.000000e+00 : f32
    %34 = vector.broadcast %cst_12 : f32 to vector<2x128xf32>
    %35 = arith.addf %34, %33 : vector<2x128xf32>
    %36 = arith.divf %34, %35 : vector<2x128xf32>
    %37 = vector.extract_strided_slice %36 {offsets = [0, 0], sizes = [2, 32], strides = [1, 1]} : vector<2x128xf32> to vector<2x32xf32>
    %38 = vector.extract_strided_slice %36 {offsets = [0, 32], sizes = [2, 32], strides = [1, 1]} : vector<2x128xf32> to vector<2x32xf32>
    %39 = vector.extract_strided_slice %36 {offsets = [0, 64], sizes = [2, 32], strides = [1, 1]} : vector<2x128xf32> to vector<2x32xf32>
    %40 = vector.extract_strided_slice %36 {offsets = [0, 96], sizes = [2, 32], strides = [1, 1]} : vector<2x128xf32> to vector<2x32xf32>
    %41 = arith.addf %38, %25 : vector<2x32xf32>
    %42 = arith.mulf %37, %39 : vector<2x32xf32>
    %43 = arith.addf %41, %42 : vector<2x32xf32>
    %44 = math.tanh %43 : vector<2x32xf32>
    %45 = arith.addf %40, %44 : vector<2x32xf32>
    %46 = vector.extract_strided_slice %7 {offsets = [0, 2, 0], sizes = [2, 1, 128], strides = [1, 1, 1]} : vector<2x8x128xf32> to vector<2x1x128xf32>
    %47 = vector.shape_cast %46 : vector<2x1x128xf32> to vector<2x128xf32>
    %cst_13 = arith.constant dense<0.000000e+00> : vector<2x128xf32>
    %48 = tpu.matmul %45, %2, %cst_13 {dimension_numbers = #tpu.dot_dimension_numbers<[1], [0], [0], [1], [0, 0, 1, 1], [], []>} : vector<2x32xf32>, vector<32x128xf32>, vector<2x128xf32> -> vector<2x128xf32>
    %49 = arith.addf %47, %48 : vector<2x128xf32>
    %50 = arith.negf %49 : vector<2x128xf32>
    %51 = math.exp %50 : vector<2x128xf32>
    %cst_14 = arith.constant 1.000000e+00 : f32
    %52 = vector.broadcast %cst_14 : f32 to vector<2x128xf32>
    %53 = arith.addf %52, %51 : vector<2x128xf32>
    %54 = arith.divf %52, %53 : vector<2x128xf32>
    %55 = vector.extract_strided_slice %54 {offsets = [0, 0], sizes = [2, 32], strides = [1, 1]} : vector<2x128xf32> to vector<2x32xf32>
    %56 = vector.extract_strided_slice %54 {offsets = [0, 32], sizes = [2, 32], strides = [1, 1]} : vector<2x128xf32> to vector<2x32xf32>
    %57 = vector.extract_strided_slice %54 {offsets = [0, 64], sizes = [2, 32], strides = [1, 1]} : vector<2x128xf32> to vector<2x32xf32>
    %58 = vector.extract_strided_slice %54 {offsets = [0, 96], sizes = [2, 32], strides = [1, 1]} : vector<2x128xf32> to vector<2x32xf32>
    %59 = arith.addf %56, %43 : vector<2x32xf32>
    %60 = arith.mulf %55, %57 : vector<2x32xf32>
    %61 = arith.addf %59, %60 : vector<2x32xf32>
    %62 = math.tanh %61 : vector<2x32xf32>
    %63 = arith.addf %58, %62 : vector<2x32xf32>
    %64 = vector.extract_strided_slice %7 {offsets = [0, 3, 0], sizes = [2, 1, 128], strides = [1, 1, 1]} : vector<2x8x128xf32> to vector<2x1x128xf32>
    %65 = vector.shape_cast %64 : vector<2x1x128xf32> to vector<2x128xf32>
    %cst_15 = arith.constant dense<0.000000e+00> : vector<2x128xf32>
    %66 = tpu.matmul %63, %2, %cst_15 {dimension_numbers = #tpu.dot_dimension_numbers<[1], [0], [0], [1], [0, 0, 1, 1], [], []>} : vector<2x32xf32>, vector<32x128xf32>, vector<2x128xf32> -> vector<2x128xf32>
    %67 = arith.addf %65, %66 : vector<2x128xf32>
    %68 = arith.negf %67 : vector<2x128xf32>
    %69 = math.exp %68 : vector<2x128xf32>
    %cst_16 = arith.constant 1.000000e+00 : f32
    %70 = vector.broadcast %cst_16 : f32 to vector<2x128xf32>
    %71 = arith.addf %70, %69 : vector<2x128xf32>
    %72 = arith.divf %70, %71 : vector<2x128xf32>
    %73 = vector.extract_strided_slice %72 {offsets = [0, 0], sizes = [2, 32], strides = [1, 1]} : vector<2x128xf32> to vector<2x32xf32>
    %74 = vector.extract_strided_slice %72 {offsets = [0, 32], sizes = [2, 32], strides = [1, 1]} : vector<2x128xf32> to vector<2x32xf32>
    %75 = vector.extract_strided_slice %72 {offsets = [0, 64], sizes = [2, 32], strides = [1, 1]} : vector<2x128xf32> to vector<2x32xf32>
    %76 = vector.extract_strided_slice %72 {offsets = [0, 96], sizes = [2, 32], strides = [1, 1]} : vector<2x128xf32> to vector<2x32xf32>
    %77 = arith.addf %74, %61 : vector<2x32xf32>
    %78 = arith.mulf %73, %75 : vector<2x32xf32>
    %79 = arith.addf %77, %78 : vector<2x32xf32>
    %80 = math.tanh %79 : vector<2x32xf32>
    %81 = arith.addf %76, %80 : vector<2x32xf32>
    %82 = tpu.concatenate %27, %45, %63, %81 in 1 : vector<2x32xf32>, vector<2x32xf32>, vector<2x32xf32>, vector<2x32xf32> -> vector<2x128xf32>
    %c0_17 = arith.constant 0 : index
    %c0_18 = arith.constant 0 : index
    %83 = vector.load %arg5[%c0_17, %c0_18] : memref<2x256xf32, #tpu.memory_space<vmem>>, vector<2x128xf32>
    tpu.vector_store %arg5[%c0_17, %c0_18], %82 {strides = array<i32>} : memref<2x256xf32, #tpu.memory_space<vmem>>, vector<2x128xf32>,
    %84 = vector.extract_strided_slice %7 {offsets = [0, 4, 0], sizes = [2, 1, 128], strides = [1, 1, 1]} : vector<2x8x128xf32> to vector<2x1x128xf32>
    %85 = vector.shape_cast %84 : vector<2x1x128xf32> to vector<2x128xf32>
    %cst_19 = arith.constant dense<0.000000e+00> : vector<2x128xf32>
    %86 = tpu.matmul %81, %2, %cst_19 {dimension_numbers = #tpu.dot_dimension_numbers<[1], [0], [0], [1], [0, 0, 1, 1], [], []>} : vector<2x32xf32>, vector<32x128xf32>, vector<2x128xf32> -> vector<2x128xf32>
    %87 = arith.addf %85, %86 : vector<2x128xf32>
    %88 = arith.negf %87 : vector<2x128xf32>
    %89 = math.exp %88 : vector<2x128xf32>
    %cst_20 = arith.constant 1.000000e+00 : f32
    %90 = vector.broadcast %cst_20 : f32 to vector<2x128xf32>
    %91 = arith.addf %90, %89 : vector<2x128xf32>
    %92 = arith.divf %90, %91 : vector<2x128xf32>
    %93 = vector.extract_strided_slice %92 {offsets = [0, 0], sizes = [2, 32], strides = [1, 1]} : vector<2x128xf32> to vector<2x32xf32>
    %94 = vector.extract_strided_slice %92 {offsets = [0, 32], sizes = [2, 32], strides = [1, 1]} : vector<2x128xf32> to vector<2x32xf32>
    %95 = vector.extract_strided_slice %92 {offsets = [0, 64], sizes = [2, 32], strides = [1, 1]} : vector<2x128xf32> to vector<2x32xf32>
    %96 = vector.extract_strided_slice %92 {offsets = [0, 96], sizes = [2, 32], strides = [1, 1]} : vector<2x128xf32> to vector<2x32xf32>
    %97 = arith.addf %94, %79 : vector<2x32xf32>
    %98 = arith.mulf %93, %95 : vector<2x32xf32>
    %99 = arith.addf %97, %98 : vector<2x32xf32>
    %100 = math.tanh %99 : vector<2x32xf32>
    %101 = arith.addf %96, %100 : vector<2x32xf32>
    %102 = vector.extract_strided_slice %7 {offsets = [0, 5, 0], sizes = [2, 1, 128], strides = [1, 1, 1]} : vector<2x8x128xf32> to vector<2x1x128xf32>
    %103 = vector.shape_cast %102 : vector<2x1x128xf32> to vector<2x128xf32>
    %cst_21 = arith.constant dense<0.000000e+00> : vector<2x128xf32>
    %104 = tpu.matmul %101, %2, %cst_21 {dimension_numbers = #tpu.dot_dimension_numbers<[1], [0], [0], [1], [0, 0, 1, 1], [], []>} : vector<2x32xf32>, vector<32x128xf32>, vector<2x128xf32> -> vector<2x128xf32>
    %105 = arith.addf %103, %104 : vector<2x128xf32>
    %106 = arith.negf %105 : vector<2x128xf32>
    %107 = math.exp %106 : vector<2x128xf32>
    %cst_22 = arith.constant 1.000000e+00 : f32
    %108 = vector.broadcast %cst_22 : f32 to vector<2x128xf32>
    %109 = arith.addf %108, %107 : vector<2x128xf32>
    %110 = arith.divf %108, %109 : vector<2x128xf32>
    %111 = vector.extract_strided_slice %110 {offsets = [0, 0], sizes = [2, 32], strides = [1, 1]} : vector<2x128xf32> to vector<2x32xf32>
    %112 = vector.extract_strided_slice %110 {offsets = [0, 32], sizes = [2, 32], strides = [1, 1]} : vector<2x128xf32> to vector<2x32xf32>
    %113 = vector.extract_strided_slice %110 {offsets = [0, 64], sizes = [2, 32], strides = [1, 1]} : vector<2x128xf32> to vector<2x32xf32>
    %114 = vector.extract_strided_slice %110 {offsets = [0, 96], sizes = [2, 32], strides = [1, 1]} : vector<2x128xf32> to vector<2x32xf32>
    %115 = arith.addf %112, %99 : vector<2x32xf32>
    %116 = arith.mulf %111, %113 : vector<2x32xf32>
    %117 = arith.addf %115, %116 : vector<2x32xf32>
    %118 = math.tanh %117 : vector<2x32xf32>
    %119 = arith.addf %114, %118 : vector<2x32xf32>
    %120 = vector.extract_strided_slice %7 {offsets = [0, 6, 0], sizes = [2, 1, 128], strides = [1, 1, 1]} : vector<2x8x128xf32> to vector<2x1x128xf32>
    %121 = vector.shape_cast %120 : vector<2x1x128xf32> to vector<2x128xf32>
    %cst_23 = arith.constant dense<0.000000e+00> : vector<2x128xf32>
    %122 = tpu.matmul %119, %2, %cst_23 {dimension_numbers = #tpu.dot_dimension_numbers<[1], [0], [0], [1], [0, 0, 1, 1], [], []>} : vector<2x32xf32>, vector<32x128xf32>, vector<2x128xf32> -> vector<2x128xf32>
    %123 = arith.addf %121, %122 : vector<2x128xf32>
    %124 = arith.negf %123 : vector<2x128xf32>
    %125 = math.exp %124 : vector<2x128xf32>
    %cst_24 = arith.constant 1.000000e+00 : f32
    %126 = vector.broadcast %cst_24 : f32 to vector<2x128xf32>
    %127 = arith.addf %126, %125 : vector<2x128xf32>
    %128 = arith.divf %126, %127 : vector<2x128xf32>
    %129 = vector.extract_strided_slice %128 {offsets = [0, 0], sizes = [2, 32], strides = [1, 1]} : vector<2x128xf32> to vector<2x32xf32>
    %130 = vector.extract_strided_slice %128 {offsets = [0, 32], sizes = [2, 32], strides = [1, 1]} : vector<2x128xf32> to vector<2x32xf32>
    %131 = vector.extract_strided_slice %128 {offsets = [0, 64], sizes = [2, 32], strides = [1, 1]} : vector<2x128xf32> to vector<2x32xf32>
    %132 = vector.extract_strided_slice %128 {offsets = [0, 96], sizes = [2, 32], strides = [1, 1]} : vector<2x128xf32> to vector<2x32xf32>
    %133 = arith.addf %130, %117 : vector<2x32xf32>
    %134 = arith.mulf %129, %131 : vector<2x32xf32>
    %135 = arith.addf %133, %134 : vector<2x32xf32>
    %136 = math.tanh %135 : vector<2x32xf32>
    %137 = arith.addf %132, %136 : vector<2x32xf32>
    %138 = vector.extract_strided_slice %7 {offsets = [0, 7, 0], sizes = [2, 1, 128], strides = [1, 1, 1]} : vector<2x8x128xf32> to vector<2x1x128xf32>
    %139 = vector.shape_cast %138 : vector<2x1x128xf32> to vector<2x128xf32>
    %cst_25 = arith.constant dense<0.000000e+00> : vector<2x128xf32>
    %140 = tpu.matmul %137, %2, %cst_25 {dimension_numbers = #tpu.dot_dimension_numbers<[1], [0], [0], [1], [0, 0, 1, 1], [], []>} : vector<2x32xf32>, vector<32x128xf32>, vector<2x128xf32> -> vector<2x128xf32>
    %141 = arith.addf %139, %140 : vector<2x128xf32>
    %142 = arith.negf %141 : vector<2x128xf32>
    %143 = math.exp %142 : vector<2x128xf32>
    %cst_26 = arith.constant 1.000000e+00 : f32
    %144 = vector.broadcast %cst_26 : f32 to vector<2x128xf32>
    %145 = arith.addf %144, %143 : vector<2x128xf32>
    %146 = arith.divf %144, %145 : vector<2x128xf32>
    %147 = vector.extract_strided_slice %146 {offsets = [0, 0], sizes = [2, 32], strides = [1, 1]} : vector<2x128xf32> to vector<2x32xf32>
    %148 = vector.extract_strided_slice %146 {offsets = [0, 32], sizes = [2, 32], strides = [1, 1]} : vector<2x128xf32> to vector<2x32xf32>
    %149 = vector.extract_strided_slice %146 {offsets = [0, 64], sizes = [2, 32], strides = [1, 1]} : vector<2x128xf32> to vector<2x32xf32>
    %150 = vector.extract_strided_slice %146 {offsets = [0, 96], sizes = [2, 32], strides = [1, 1]} : vector<2x128xf32> to vector<2x32xf32>
    %151 = arith.addf %148, %135 : vector<2x32xf32>
    %152 = arith.mulf %147, %149 : vector<2x32xf32>
    %153 = arith.addf %151, %152 : vector<2x32xf32>
    %154 = math.tanh %153 : vector<2x32xf32>
    %155 = arith.addf %150, %154 : vector<2x32xf32>
    %156 = tpu.concatenate %101, %119, %137, %155 in 1 : vector<2x32xf32>, vector<2x32xf32>, vector<2x32xf32>, vector<2x32xf32> -> vector<2x128xf32>
    %c0_27 = arith.constant 0 : index
    %c128 = arith.constant 128 : index
    %157 = vector.load %arg5[%c0_27, %c128] : memref<2x256xf32, #tpu.memory_space<vmem>>, vector<2x128xf32>
    tpu.vector_store %arg5[%c0_27, %c128], %156 {strides = array<i32>} : memref<2x256xf32, #tpu.memory_space<vmem>>, vector<2x128xf32>,
    %c0_28 = arith.constant 0 : index
    %c0_29 = arith.constant 0 : index
    %158 = vector.load %arg6[%c0_28, %c0_29] : memref<2x32xf32, #tpu.memory_space<vmem>>, vector<2x32xf32>
    tpu.vector_store %arg6[%c0_28, %c0_29], %155 {strides = array<i32>} : memref<2x32xf32, #tpu.memory_space<vmem>>, vector<2x32xf32>,
    %c0_30 = arith.constant 0 : index
    %c0_31 = arith.constant 0 : index
    %159 = vector.load %arg7[%c0_30, %c0_31] : memref<2x32xf32, #tpu.memory_space<vmem>>, vector<2x32xf32>
    tpu.vector_store %arg7[%c0_30, %c0_31], %153 {strides = array<i32>} : memref<2x32xf32, #tpu.memory_space<vmem>>, vector<2x32xf32>,
    return
  }
  func.func @transform_0(%arg0: i32) -> (i32, i32) {
    %c0_i32 = arith.constant 0 : i32
    %c0_i32_0 = arith.constant 0 : i32
    return %arg0, %c0_i32 : i32, i32
  }
  func.func @transform_1(%arg0: i32) -> (i32, i32) {
    %c0_i32 = arith.constant 0 : i32
    %c0_i32_0 = arith.constant 0 : i32
    %c0_i32_1 = arith.constant 0 : i32
    return %c0_i32, %c0_i32_0 : i32, i32
  }
  func.func @transform_2(%arg0: i32) -> (i32, i32) {
    %c0_i32 = arith.constant 0 : i32
    %c0_i32_0 = arith.constant 0 : i32
    %c0_i32_1 = arith.constant 0 : i32
    return %c0_i32, %c0_i32_0 : i32, i32
  }
  func.func @transform_3(%arg0: i32) -> (i32, i32) {
    %c0_i32 = arith.constant 0 : i32
    %c0_i32_0 = arith.constant 0 : i32
    %c0_i32_1 = arith.constant 0 : i32
    return %c0_i32, %c0_i32_0 : i32, i32
  }
  func.func @transform_4(%arg0: i32) -> (i32, i32) {
    %c0_i32 = arith.constant 0 : i32
    %c0_i32_0 = arith.constant 0 : i32
    return %arg0, %c0_i32 : i32, i32
  }
  func.func @transform_5(%arg0: i32) -> (i32, i32) {
    %c0_i32 = arith.constant 0 : i32
    %c0_i32_0 = arith.constant 0 : i32
    return %arg0, %c0_i32 : i32, i32
  }
  func.func @transform_6(%arg0: i32) -> (i32, i32) {
    %c0_i32 = arith.constant 0 : i32
    %c0_i32_0 = arith.constant 0 : i32
    return %arg0, %c0_i32 : i32, i32
  }
}

</mosaic_0001>

<llo_original>
// kernel: tpu_custom_call.1
$region0: #{tpu_custom_call.1}
  #allocation0 [shape = 'u32[]', space=smem, size = 0x4, offset = 0x4, fixed_abs, tag = 'smem constant byte address 0x4 - core index']
  #allocation1 [shape = 'u32[144,128]{1,0:T(1,128)}', space=vmem, size = 0x12000, scoped, tag = 'internal scratch']
  %s0 = inlined_call_operand.vmem [shape: f32[16,4], index: 0, kind: input, shape index: {}]
  %s1 = inlined_call_operand.vmem [shape: f32[4,128], index: 1, kind: input, shape index: {}]
  %s2 = inlined_call_operand.hbm [shape: f32[32,128], index: 2, kind: input, shape index: {}]
  %s3 = inlined_call_operand.vmem [shape: f32[1,128], index: 3, kind: input, shape index: {}]
  %s4 = inlined_call_operand.hbm [shape: f32[2,256], index: 4, kind: output, shape index: {0}]
  %s5 = inlined_call_operand.hbm [shape: f32[2,32], index: 5, kind: output, shape index: {1}]
  %s6 = inlined_call_operand.hbm [shape: f32[2,32], index: 6, kind: output, shape index: {2}]
  %7 = xla_tuple %s4, %s5, %s6
  %s8 = sld [smem:[#allocation0]]
  $region46: #{tpu_custom_call.1} parent=0
    _
  %s10 = ssub.s32 1, %s8
  %s11 = scalar_select 0, %s10, %s8
  $region1: #{tpu_custom_call.1} parent=0
    #allocation2 [shape = 'u8[16384]{0}', space=vmem, size = 0x4000, scoped, tag = 'input window, operand 2, single buffered']
    #allocation3 [shape = 's32[1]{0}', space=sflag, size = 0x4, scoped, tag = 'scoped memory for tpu_custom_call.1']
    #allocation4 [shape = 's32[1]{0}', space=sflag, size = 0x4, scoped, tag = 'scoped memory for tpu_custom_call.1']
    #allocation5 [shape = 'u8[2048]{0}', space=vmem, size = 0x800, scoped, tag = 'output window, operand 0, single buffered']
    #allocation6 [shape = 'u8[1024]{0}', space=vmem, size = 0x400, scoped, tag = 'output window, operand 1, single buffered']
    #allocation7 [shape = 's32[1]{0}', space=sflag, size = 0x4, scoped, tag = 'scoped memory for tpu_custom_call.1']
    #allocation8 [shape = 'u8[1024]{0}', space=vmem, size = 0x400, scoped, tag = 'output window, operand 2, single buffered']
    %12 = vsyncpa [#allocation3], 0
    %13 = vsyncpa [#allocation4], 0
    %14 = vsyncpa [#allocation7], 0
    // Predicated region
    $region2: #{tpu_custom_call.1} parent=1 // pred_check
      _
    $region3: #{tpu_custom_call.1} parent=1 // pred_check_branch
      %16 = sbr.rel (0) target = $region5
    $region4: #{tpu_custom_call.1} parent=1 // pred_region
      _
    $region5: #{tpu_custom_call.1} parent=1 // pred_fallthru
      _
    // Predicated region
    $region6: #{tpu_custom_call.1} parent=1 // pred_check
      _
    $region7: #{tpu_custom_call.1} parent=1 // pred_check_branch
      %18 = sbr.rel (0) target = $region9
    $region8: #{tpu_custom_call.1} parent=1 // pred_region
      _
    $region9: #{tpu_custom_call.1} parent=1 // pred_fallthru
      _
    // Predicated region
    $region10: #{tpu_custom_call.1} parent=1 // pred_check
      _
    $region11: #{tpu_custom_call.1} parent=1 // pred_check_branch
      %20 = sbr.rel (0) target = $region13
    $region12: #{tpu_custom_call.1} parent=1 // pred_region
      %s22 = ssub.s32 512, 512
      %23 = vsyncadd [#allocation3], %s22
      %s24 = sshll.u32 [#allocation2], 4
      %s25 = int_to_ptr.vmem [resolvable:$true] %s24
      %30 = dma.hbm_to_vmem [thread:$0]  %s2, 512, %s25, [#allocation3], 128, 128, 8
    $region13: #{tpu_custom_call.1} parent=1 // pred_fallthru
      _
    // Predicated region
    $region14: #{tpu_custom_call.1} parent=1 // pred_check
      _
    $region15: #{tpu_custom_call.1} parent=1 // pred_check_branch
      %32 = sbr.rel (0) target = $region17
    $region16: #{tpu_custom_call.1} parent=1 // pred_region
      _
    $region17: #{tpu_custom_call.1} parent=1 // pred_fallthru
      _
    // Predicated region
    $region18: #{tpu_custom_call.1} parent=1 // pred_check
      _
    $region19: #{tpu_custom_call.1} parent=1 // pred_check_branch
      %34 = sbr.rel (0) target = $region21
    $region20: #{tpu_custom_call.1} parent=1 // pred_region
      %35 = dma.done [#allocation3], 512
    $region21: #{tpu_custom_call.1} parent=1 // pred_fallthru
      _
    %v36 = vld [vmem:[%s0] sm:$0xff]
    %v37 = vld [vmem:[%s0 + $0x8] sm:$0xff]
    %v38 = vld [vmem:[%s1] sm:$0xf]
    %v39 = vld [vmem:[#allocation2] sm:$0xff]
    %v40 = vld [vmem:[#allocation2 + $0x8] sm:$0xff]
    %v41 = vld [vmem:[#allocation2 + $0x10] sm:$0xff]
    %v42 = vld [vmem:[#allocation2 + $0x18] sm:$0xff]
    %v43 = vld [vmem:[%s3] sm:$0x1]
    %v45 = vlaneseq
    %v46 = vshrl.u32 %v45, 7
    %v47 = vsub.s32 0, %v46
    %v48 = vrot.slane %v43, %v47
    %vm50 = vcmask 31744
    %v52 = vsel %vm50, %v36, 0
    %v55 = vsel %vm50, %v37, 0
    %vm57 = vcmask 1043456
    %v59 = vsel %vm57, %v38, 0
    %61 = vmatprep.subr.mxu0 0.0
    %62 = vmatpush1.msra.mxu0 %v59
    %63 = vmatprep.subr.mxu0 0.0
    %64 = vmatpush1.msra.mxu0 0.0
    %65 = vmatprep.subr.mxu0 0.0
    %66 = vmatpush1.msra.mxu0 0.0
    %67 = vmatprep.subr.mxu0 0.0
    %68 = vmatpush1.msra.mxu0 0.0
    %69 = vmatprep.subr.mxu0 0.0
    %70 = vmatpush1.msra.mxu0 0.0
    %71 = vmatprep.subr.mxu0 0.0
    %72 = vmatpush1.msra.mxu0 0.0
    %73 = vmatprep.subr.mxu0 0.0
    %74 = vmatpush1.msra.mxu0 0.0
    %75 = vmatprep.subr.mxu0 0.0
    %76 = vmatpush1.msra.mxu0 0.0
    %77 = vmatprep.subr.mxu0 0.0
    %78 = vmatpush1.msra.mxu0 0.0
    %79 = vmatprep.subr.mxu0 0.0
    %80 = vmatpush1.msra.mxu0 0.0
    %81 = vmatprep.subr.mxu0 0.0
    %82 = vmatpush1.msra.mxu0 0.0
    %83 = vmatprep.subr.mxu0 0.0
    %84 = vmatpush1.msra.mxu0 0.0
    %85 = vmatprep.subr.mxu0 0.0
    %86 = vmatpush1.msra.mxu0 0.0
    %87 = vmatprep.subr.mxu0 0.0
    %88 = vmatpush1.msra.mxu0 0.0
    %89 = vmatprep.subr.mxu0 0.0
    %90 = vmatpush1.msra.mxu0 0.0
    %91 = vmatprep.subr.mxu0 0.0
    %92 = vmatpush1.msra.mxu0 0.0
    %93 = vmatprep.subr.mxu0 0.0
    %94 = vmatpush1.msra.mxu0 0.0
    %95 = vmatprep.subr.mxu0 0.0
    %96 = vmatpush1.msra.mxu0 0.0
    %97 = vmatprep.subr.mxu0 0.0
    %98 = vmatpush1.msra.mxu0 0.0
    %99 = vmatprep.subr.mxu0 0.0
    %100 = vmatpush1.msra.mxu0 0.0
    %101 = vmatprep.subr.mxu0 0.0
    %102 = vmatpush1.msra.mxu0 0.0
    %103 = vmatprep.subr.mxu0 0.0
    %104 = vmatpush1.msra.mxu0 0.0
    %105 = vmatprep.subr.mxu0 0.0
    %106 = vmatpush1.msra.mxu0 0.0
    %107 = vmatprep.subr.mxu0 0.0
    %108 = vmatpush1.msra.mxu0 0.0
    %109 = vmatprep.subr.mxu0 0.0
    %110 = vmatpush1.msra.mxu0 0.0
    %111 = vmatprep.subr.mxu0 0.0
    %112 = vmatpush1.msra.mxu0 0.0
    %113 = vmatprep.subr.mxu0 0.0
    %114 = vmatpush1.msra.mxu0 0.0
    %115 = vmatprep.subr.mxu0 0.0
    %116 = vmatpush1.msra.mxu0 0.0
    %117 = vmatprep.subr.mxu0 0.0
    %118 = vmatpush1.msra.mxu0 0.0
    %119 = vmatprep.subr.mxu0 0.0
    %120 = vmatpush1.msra.mxu0 0.0
    %121 = vmatprep.subr.mxu0 0.0
    %122 = vmatpush1.msra.mxu0 0.0
    %123 = vmatprep.subr.mxu0 0.0
    %124 = vmatpush1.msra.mxu0 0.0
    %125 = vmatprep.mubr.f32.mxu0 0.0
    %126 = vmatmul.mubr.f32.gmra.mrb[0].mxu0 %v52
    %v127 = vpop.f32.mrb[0].mxu0
    %v128 = vadd.f32 %v48, %v127
    %v129 = vpop.f32.mrb[0].mxu0
    %130 = vmatprep.mubr.f32.mxu0 0.0
    %131 = vmatmul.mubr.f32.gmra.mrb[0].mxu0 %v55
    %v132 = vpop.f32.mrb[0].mxu0
    %v133 = vadd.f32 %v48, %v132
    %v134 = vpop.f32.mrb[0].mxu0
    %135 = vdwg.mxu0
    %vm136 = vcmask 261120
    %v138 = vsel %vm136, 0.0, 0
    %140 = vmatprep.subr.mxu0 0.0
    %141 = vmatpush1.msra.mxu0 %v39
    %142 = vmatprep.subr.mxu0 0.0
    %143 = vmatpush1.msra.mxu0 %v40
    %144 = vmatprep.subr.mxu0 0.0
    %145 = vmatpush1.msra.mxu0 %v41
    %146 = vmatprep.subr.mxu0 0.0
    %147 = vmatpush1.msra.mxu0 %v42
    %148 = vmatprep.subr.mxu0 0.0
    %149 = vmatpush1.msra.mxu0 0.0
    %150 = vmatprep.subr.mxu0 0.0
    %151 = vmatpush1.msra.mxu0 0.0
    %152 = vmatprep.subr.mxu0 0.0
    %153 = vmatpush1.msra.mxu0 0.0
    %154 = vmatprep.subr.mxu0 0.0
    %155 = vmatpush1.msra.mxu0 0.0
    %156 = vmatprep.subr.mxu0 0.0
    %157 = vmatpush1.msra.mxu0 0.0
    %158 = vmatprep.subr.mxu0 0.0
    %159 = vmatpush1.msra.mxu0 0.0
    %160 = vmatprep.subr.mxu0 0.0
    %161 = vmatpush1.msra.mxu0 0.0
    %162 = vmatprep.subr.mxu0 0.0
    %163 = vmatpush1.msra.mxu0 0.0
    %164 = vmatprep.subr.mxu0 0.0
    %165 = vmatpush1.msra.mxu0 0.0
    %166 = vmatprep.subr.mxu0 0.0
    %167 = vmatpush1.msra.mxu0 0.0
    %168 = vmatprep.subr.mxu0 0.0
    %169 = vmatpush1.msra.mxu0 0.0
    %170 = vmatprep.subr.mxu0 0.0
    %171 = vmatpush1.msra.mxu0 0.0
    %172 = vmatprep.subr.mxu0 0.0
    %173 = vmatpush1.msra.mxu0 0.0
    %174 = vmatprep.subr.mxu0 0.0
    %175 = vmatpush1.msra.mxu0 0.0
    %176 = vmatprep.subr.mxu0 0.0
    %177 = vmatpush1.msra.mxu0 0.0
    %178 = vmatprep.subr.mxu0 0.0
    %179 = vmatpush1.msra.mxu0 0.0
    %180 = vmatprep.subr.mxu0 0.0
    %181 = vmatpush1.msra.mxu0 0.0
    %182 = vmatprep.subr.mxu0 0.0
    %183 = vmatpush1.msra.mxu0 0.0
    %184 = vmatprep.subr.mxu0 0.0
    %185 = vmatpush1.msra.mxu0 0.0
    %186 = vmatprep.subr.mxu0 0.0
    %187 = vmatpush1.msra.mxu0 0.0
    %188 = vmatprep.subr.mxu0 0.0
    %189 = vmatpush1.msra.mxu0 0.0
    %190 = vmatprep.subr.mxu0 0.0
    %191 = vmatpush1.msra.mxu0 0.0
    %192 = vmatprep.subr.mxu0 0.0
    %193 = vmatpush1.msra.mxu0 0.0
    %194 = vmatprep.subr.mxu0 0.0
    %195 = vmatpush1.msra.mxu0 0.0
    %196 = vmatprep.subr.mxu0 0.0
    %197 = vmatpush1.msra.mxu0 0.0
    %198 = vmatprep.subr.mxu0 0.0
    %199 = vmatpush1.msra.mxu0 0.0
    %200 = vmatprep.subr.mxu0 0.0
    %201 = vmatpush1.msra.mxu0 0.0
    %202 = vmatprep.subr.mxu0 0.0
    %203 = vmatpush1.msra.mxu0 0.0
    %204 = vmatprep.mubr.f32.mxu0 0.0
    %205 = vmatmul.mubr.f32.gmra.mrb[0].mxu0 %v138
    %v206 = vpop.f32.mrb[0].mxu0
    %v207 = vadd.f32 0.0, %v206
    %v208 = vpop.f32.mrb[0].mxu0
    %209 = vdwg.mxu0
    %v211 = vrot.slane %v207, 1
    %v214 = vadd.f32 %v128, %v207
    %v215 = vadd.f32 %v133, %v211
    %v216 = vxor.u32 %v214, 2147483648
    %v217 = vxor.u32 %v215, 2147483648
    %v218 = vmul.f32 %v216, 1.442695
    %v219 = vpow.pop %v218
    %v220 = vmul.f32 %v217, 1.442695
    %v221 = vpow.pop %v220
    %v222 = vadd.f32 %v219, 1.0
    %v223 = vadd.f32 %v221, 1.0
    %v224 = vrcp.pop %v222
    %v225 = vmul.f32 1.0, %v224
    %v226 = vrcp.pop %v223
    %v227 = vmul.f32 1.0, %v226
    %v228 = vadd.f32 %v225, 0.0
    %v229 = vadd.f32 %v227, 0.0
    %232 = vrot.lane.b32.xlu0 %v225, 64
    %v233 = vpop.permute.xlu0 %232
    %234 = vrot.lane.b32.xlu0 %v227, 64
    %v235 = vpop.permute.xlu0 %234
    %v238 = vmul.f32 %v225, %v233
    %v239 = vmul.f32 %v227, %v235
    %242 = vrot.lane.b32.xlu0 %v238, 32
    %v243 = vpop.permute.xlu0 %242
    %244 = vrot.lane.b32.xlu0 %v239, 32
    %v245 = vpop.permute.xlu0 %244
    %v248 = vadd.f32 %v228, %v243
    %v249 = vadd.f32 %v229, %v245
    %v250 = vtanh.pop %v248
    %v251 = vtanh.pop %v249
    %254 = vrot.lane.b32.xlu0 %v250, 64
    %v255 = vpop.permute.xlu0 %254
    %256 = vrot.lane.b32.xlu0 %v251, 64
    %v257 = vpop.permute.xlu0 %256
    %v260 = vadd.f32 %v225, %v255
    %v261 = vadd.f32 %v227, %v257
    %v264 = vrot.slane %v261, 7
    %vm265 = vcmask 1041409
    %v266 = vsel %vm265, %v264, %v260
    %267 = vrot.lane.b32.xlu0 %v266, 32
    %v268 = vpop.permute.xlu0 %267
    %v269 = vsel %vm136, %v268, 0
    %271 = vmatprep.subr.mxu0 0.0
    %272 = vmatpush1.msra.mxu0 %v39
    %273 = vmatprep.subr.mxu0 0.0
    %274 = vmatpush1.msra.mxu0 %v40
    %275 = vmatprep.subr.mxu0 0.0
    %276 = vmatpush1.msra.mxu0 %v41
    %277 = vmatprep.subr.mxu0 0.0
    %278 = vmatpush1.msra.mxu0 %v42
    %279 = vmatprep.subr.mxu0 0.0
    %280 = vmatpush1.msra.mxu0 0.0
    %281 = vmatprep.subr.mxu0 0.0
    %282 = vmatpush1.msra.mxu0 0.0
    %283 = vmatprep.subr.mxu0 0.0
    %284 = vmatpush1.msra.mxu0 0.0
    %285 = vmatprep.subr.mxu0 0.0
    %286 = vmatpush1.msra.mxu0 0.0
    %287 = vmatprep.subr.mxu0 0.0
    %288 = vmatpush1.msra.mxu0 0.0
    %289 = vmatprep.subr.mxu0 0.0
    %290 = vmatpush1.msra.mxu0 0.0
    %291 = vmatprep.subr.mxu0 0.0
    %292 = vmatpush1.msra.mxu0 0.0
    %293 = vmatprep.subr.mxu0 0.0
    %294 = vmatpush1.msra.mxu0 0.0
    %295 = vmatprep.subr.mxu0 0.0
    %296 = vmatpush1.msra.mxu0 0.0
    %297 = vmatprep.subr.mxu0 0.0
    %298 = vmatpush1.msra.mxu0 0.0
    %299 = vmatprep.subr.mxu0 0.0
    %300 = vmatpush1.msra.mxu0 0.0
    %301 = vmatprep.subr.mxu0 0.0
    %302 = vmatpush1.msra.mxu0 0.0
    %303 = vmatprep.subr.mxu0 0.0
    %304 = vmatpush1.msra.mxu0 0.0
    %305 = vmatprep.subr.mxu0 0.0
    %306 = vmatpush1.msra.mxu0 0.0
    %307 = vmatprep.subr.mxu0 0.0
    %308 = vmatpush1.msra.mxu0 0.0
    %309 = vmatprep.subr.mxu0 0.0
    %310 = vmatpush1.msra.mxu0 0.0
    %311 = vmatprep.subr.mxu0 0.0
    %312 = vmatpush1.msra.mxu0 0.0
    %313 = vmatprep.subr.mxu0 0.0
    %314 = vmatpush1.msra.mxu0 0.0
    %315 = vmatprep.subr.mxu0 0.0
    %316 = vmatpush1.msra.mxu0 0.0
    %317 = vmatprep.subr.mxu0 0.0
    %318 = vmatpush1.msra.mxu0 0.0
    %319 = vmatprep.subr.mxu0 0.0
    %320 = vmatpush1.msra.mxu0 0.0
    %321 = vmatprep.subr.mxu0 0.0
    %322 = vmatpush1.msra.mxu0 0.0
    %323 = vmatprep.subr.mxu0 0.0
    %324 = vmatpush1.msra.mxu0 0.0
    %325 = vmatprep.subr.mxu0 0.0
    %326 = vmatpush1.msra.mxu0 0.0
    %327 = vmatprep.subr.mxu0 0.0
    %328 = vmatpush1.msra.mxu0 0.0
    %329 = vmatprep.subr.mxu0 0.0
    %330 = vmatpush1.msra.mxu0 0.0
    %331 = vmatprep.subr.mxu0 0.0
    %332 = vmatpush1.msra.mxu0 0.0
    %333 = vmatprep.subr.mxu0 0.0
    %334 = vmatpush1.msra.mxu0 0.0
    %335 = vmatprep.mubr.f32.mxu0 0.0
    %336 = vmatmul.mubr.f32.gmra.mrb[0].mxu0 %v269
    %v337 = vpop.f32.mrb[0].mxu0
    %v338 = vadd.f32 0.0, %v337
    %v339 = vpop.f32.mrb[0].mxu0
    %340 = vdwg.mxu0
    %v342 = vrot.slane %v338, 7
    %v345 = vadd.f32 %v128, %v342
    %v346 = vadd.f32 %v133, %v338
    %v347 = vxor.u32 %v345, 2147483648
    %v348 = vxor.u32 %v346, 2147483648
    %v349 = vmul.f32 %v347, 1.442695
    %v350 = vpow.pop %v349
    %v351 = vmul.f32 %v348, 1.442695
    %v352 = vpow.pop %v351
    %v353 = vadd.f32 %v350, 1.0
    %v354 = vadd.f32 %v352, 1.0
    %v355 = vrcp.pop %v353
    %v356 = vmul.f32 1.0, %v355
    %v357 = vrcp.pop %v354
    %v358 = vmul.f32 1.0, %v357
    %v361 = vrot.slane %v248, 7
    %v362 = vrot.slane %v249, 7
    %v365 = vadd.f32 %v356, %v361
    %v366 = vadd.f32 %v358, %v362
    %369 = vrot.lane.b32.xlu0 %v356, 64
    %v370 = vpop.permute.xlu0 %369
    %371 = vrot.lane.b32.xlu0 %v358, 64
    %v372 = vpop.permute.xlu0 %371
    %v375 = vmul.f32 %v356, %v370
    %v376 = vmul.f32 %v358, %v372
    %379 = vrot.lane.b32.xlu0 %v375, 32
    %v380 = vpop.permute.xlu0 %379
    %381 = vrot.lane.b32.xlu0 %v376, 32
    %v382 = vpop.permute.xlu0 %381
    %v385 = vadd.f32 %v365, %v380
    %v386 = vadd.f32 %v366, %v382
    %v387 = vtanh.pop %v385
    %v388 = vtanh.pop %v386
    %391 = vrot.lane.b32.xlu0 %v387, 64
    %v392 = vpop.permute.xlu0 %391
    %393 = vrot.lane.b32.xlu0 %v388, 64
    %v394 = vpop.permute.xlu0 %393
    %v397 = vadd.f32 %v356, %v392
    %v398 = vadd.f32 %v358, %v394
    %v401 = vrot.slane %v397, 1
    %v402 = vsel %vm265, %v398, %v401
    %403 = vrot.lane.b32.xlu0 %v402, 32
    %v404 = vpop.permute.xlu0 %403
    %v405 = vsel %vm136, %v404, 0
    %407 = vmatprep.subr.mxu0 0.0
    %408 = vmatpush1.msra.mxu0 %v39
    %409 = vmatprep.subr.mxu0 0.0
    %410 = vmatpush1.msra.mxu0 %v40
    %411 = vmatprep.subr.mxu0 0.0
    %412 = vmatpush1.msra.mxu0 %v41
    %413 = vmatprep.subr.mxu0 0.0
    %414 = vmatpush1.msra.mxu0 %v42
    %415 = vmatprep.subr.mxu0 0.0
    %416 = vmatpush1.msra.mxu0 0.0
    %417 = vmatprep.subr.mxu0 0.0
    %418 = vmatpush1.msra.mxu0 0.0
    %419 = vmatprep.subr.mxu0 0.0
    %420 = vmatpush1.msra.mxu0 0.0
    %421 = vmatprep.subr.mxu0 0.0
    %422 = vmatpush1.msra.mxu0 0.0
    %423 = vmatprep.subr.mxu0 0.0
    %424 = vmatpush1.msra.mxu0 0.0
    %425 = vmatprep.subr.mxu0 0.0
    %426 = vmatpush1.msra.mxu0 0.0
    %427 = vmatprep.subr.mxu0 0.0
    %428 = vmatpush1.msra.mxu0 0.0
    %429 = vmatprep.subr.mxu0 0.0
    %430 = vmatpush1.msra.mxu0 0.0
    %431 = vmatprep.subr.mxu0 0.0
    %432 = vmatpush1.msra.mxu0 0.0
    %433 = vmatprep.subr.mxu0 0.0
    %434 = vmatpush1.msra.mxu0 0.0
    %435 = vmatprep.subr.mxu0 0.0
    %436 = vmatpush1.msra.mxu0 0.0
    %437 = vmatprep.subr.mxu0 0.0
    %438 = vmatpush1.msra.mxu0 0.0
    %439 = vmatprep.subr.mxu0 0.0
    %440 = vmatpush1.msra.mxu0 0.0
    %441 = vmatprep.subr.mxu0 0.0
    %442 = vmatpush1.msra.mxu0 0.0
    %443 = vmatprep.subr.mxu0 0.0
    %444 = vmatpush1.msra.mxu0 0.0
    %445 = vmatprep.subr.mxu0 0.0
    %446 = vmatpush1.msra.mxu0 0.0
    %447 = vmatprep.subr.mxu0 0.0
    %448 = vmatpush1.msra.mxu0 0.0
    %449 = vmatprep.subr.mxu0 0.0
    %450 = vmatpush1.msra.mxu0 0.0
    %451 = vmatprep.subr.mxu0 0.0
    %452 = vmatpush1.msra.mxu0 0.0
    %453 = vmatprep.subr.mxu0 0.0
    %454 = vmatpush1.msra.mxu0 0.0
    %455 = vmatprep.subr.mxu0 0.0
    %456 = vmatpush1.msra.mxu0 0.0
    %457 = vmatprep.subr.mxu0 0.0
    %458 = vmatpush1.msra.mxu0 0.0
    %459 = vmatprep.subr.mxu0 0.0
    %460 = vmatpush1.msra.mxu0 0.0
    %461 = vmatprep.subr.mxu0 0.0
    %462 = vmatpush1.msra.mxu0 0.0
    %463 = vmatprep.subr.mxu0 0.0
    %464 = vmatpush1.msra.mxu0 0.0
    %465 = vmatprep.subr.mxu0 0.0
    %466 = vmatpush1.msra.mxu0 0.0
    %467 = vmatprep.subr.mxu0 0.0
    %468 = vmatpush1.msra.mxu0 0.0
    %469 = vmatprep.subr.mxu0 0.0
    %470 = vmatpush1.msra.mxu0 0.0
    %471 = vmatprep.mubr.f32.mxu0 0.0
    %472 = vmatmul.mubr.f32.gmra.mrb[0].mxu0 %v405
    %v473 = vpop.f32.mrb[0].mxu0
    %v474 = vadd.f32 0.0, %v473
    %v475 = vpop.f32.mrb[0].mxu0
    %476 = vdwg.mxu0
    %v478 = vrot.slane %v474, 6
    %v479 = vrot.slane %v474, 7
    %v482 = vadd.f32 %v128, %v478
    %v483 = vadd.f32 %v133, %v479
    %v484 = vxor.u32 %v482, 2147483648
    %v485 = vxor.u32 %v483, 2147483648
    %v486 = vmul.f32 %v484, 1.442695
    %v487 = vpow.pop %v486
    %v488 = vmul.f32 %v485, 1.442695
    %v489 = vpow.pop %v488
    %v490 = vadd.f32 %v487, 1.0
    %v491 = vadd.f32 %v489, 1.0
    %v492 = vrcp.pop %v490
    %v493 = vmul.f32 1.0, %v492
    %v494 = vrcp.pop %v491
    %v495 = vmul.f32 1.0, %v494
    %v498 = vrot.slane %v385, 7
    %v499 = vrot.slane %v386, 7
    %v502 = vadd.f32 %v493, %v498
    %v503 = vadd.f32 %v495, %v499
    %506 = vrot.lane.b32.xlu0 %v493, 64
    %v507 = vpop.permute.xlu0 %506
    %508 = vrot.lane.b32.xlu0 %v495, 64
    %v509 = vpop.permute.xlu0 %508
    %v512 = vmul.f32 %v493, %v507
    %v513 = vmul.f32 %v495, %v509
    %516 = vrot.lane.b32.xlu0 %v512, 32
    %v517 = vpop.permute.xlu0 %516
    %518 = vrot.lane.b32.xlu0 %v513, 32
    %v519 = vpop.permute.xlu0 %518
    %v522 = vadd.f32 %v502, %v517
    %v523 = vadd.f32 %v503, %v519
    %v524 = vtanh.pop %v522
    %v525 = vtanh.pop %v523
    %528 = vrot.lane.b32.xlu0 %v524, 64
    %v529 = vpop.permute.xlu0 %528
    %530 = vrot.lane.b32.xlu0 %v525, 64
    %v531 = vpop.permute.xlu0 %530
    %v534 = vadd.f32 %v493, %v529
    %v535 = vadd.f32 %v495, %v531
    %v538 = vrot.slane %v534, 2
    %v539 = vrot.slane %v535, 1
    %v540 = vsel %vm265, %v539, %v538
    %541 = vrot.lane.b32.xlu0 %v540, 32
    %v542 = vpop.permute.xlu0 %541
    %v543 = vsel %vm136, %v542, 0
    %545 = vmatprep.subr.mxu0 0.0
    %546 = vmatpush1.msra.mxu0 %v39
    %547 = vmatprep.subr.mxu0 0.0
    %548 = vmatpush1.msra.mxu0 %v40
    %549 = vmatprep.subr.mxu0 0.0
    %550 = vmatpush1.msra.mxu0 %v41
    %551 = vmatprep.subr.mxu0 0.0
    %552 = vmatpush1.msra.mxu0 %v42
    %553 = vmatprep.subr.mxu0 0.0
    %554 = vmatpush1.msra.mxu0 0.0
    %555 = vmatprep.subr.mxu0 0.0
    %556 = vmatpush1.msra.mxu0 0.0
    %557 = vmatprep.subr.mxu0 0.0
    %558 = vmatpush1.msra.mxu0 0.0
    %559 = vmatprep.subr.mxu0 0.0
    %560 = vmatpush1.msra.mxu0 0.0
    %561 = vmatprep.subr.mxu0 0.0
    %562 = vmatpush1.msra.mxu0 0.0
    %563 = vmatprep.subr.mxu0 0.0
    %564 = vmatpush1.msra.mxu0 0.0
    %565 = vmatprep.subr.mxu0 0.0
    %566 = vmatpush1.msra.mxu0 0.0
    %567 = vmatprep.subr.mxu0 0.0
    %568 = vmatpush1.msra.mxu0 0.0
    %569 = vmatprep.subr.mxu0 0.0
    %570 = vmatpush1.msra.mxu0 0.0
    %571 = vmatprep.subr.mxu0 0.0
    %572 = vmatpush1.msra.mxu0 0.0
    %573 = vmatprep.subr.mxu0 0.0
    %574 = vmatpush1.msra.mxu0 0.0
    %575 = vmatprep.subr.mxu0 0.0
    %576 = vmatpush1.msra.mxu0 0.0
    %577 = vmatprep.subr.mxu0 0.0
    %578 = vmatpush1.msra.mxu0 0.0
    %579 = vmatprep.subr.mxu0 0.0
    %580 = vmatpush1.msra.mxu0 0.0
    %581 = vmatprep.subr.mxu0 0.0
    %582 = vmatpush1.msra.mxu0 0.0
    %583 = vmatprep.subr.mxu0 0.0
    %584 = vmatpush1.msra.mxu0 0.0
    %585 = vmatprep.subr.mxu0 0.0
    %586 = vmatpush1.msra.mxu0 0.0
    %587 = vmatprep.subr.mxu0 0.0
    %588 = vmatpush1.msra.mxu0 0.0
    %589 = vmatprep.subr.mxu0 0.0
    %590 = vmatpush1.msra.mxu0 0.0
    %591 = vmatprep.subr.mxu0 0.0
    %592 = vmatpush1.msra.mxu0 0.0
    %593 = vmatprep.subr.mxu0 0.0
    %594 = vmatpush1.msra.mxu0 0.0
    %595 = vmatprep.subr.mxu0 0.0
    %596 = vmatpush1.msra.mxu0 0.0
    %597 = vmatprep.subr.mxu0 0.0
    %598 = vmatpush1.msra.mxu0 0.0
    %599 = vmatprep.subr.mxu0 0.0
    %600 = vmatpush1.msra.mxu0 0.0
    %601 = vmatprep.subr.mxu0 0.0
    %602 = vmatpush1.msra.mxu0 0.0
    %603 = vmatprep.subr.mxu0 0.0
    %604 = vmatpush1.msra.mxu0 0.0
    %605 = vmatprep.subr.mxu0 0.0
    %606 = vmatpush1.msra.mxu0 0.0
    %607 = vmatprep.subr.mxu0 0.0
    %608 = vmatpush1.msra.mxu0 0.0
    %609 = vmatprep.mubr.f32.mxu0 0.0
    %610 = vmatmul.mubr.f32.gmra.mrb[0].mxu0 %v543
    %v611 = vpop.f32.mrb[0].mxu0
    %v612 = vadd.f32 0.0, %v611
    %v613 = vpop.f32.mrb[0].mxu0
    %614 = vdwg.mxu0
    %v616 = vrot.slane %v612, 5
    %v617 = vrot.slane %v612, 6
    %v620 = vadd.f32 %v128, %v616
    %v621 = vadd.f32 %v133, %v617
    %v622 = vxor.u32 %v620, 2147483648
    %v623 = vxor.u32 %v621, 2147483648
    %v624 = vmul.f32 %v622, 1.442695
    %v625 = vpow.pop %v624
    %v626 = vmul.f32 %v623, 1.442695
    %v627 = vpow.pop %v626
    %v628 = vadd.f32 %v625, 1.0
    %v629 = vadd.f32 %v627, 1.0
    %v630 = vrcp.pop %v628
    %v631 = vmul.f32 1.0, %v630
    %v632 = vrcp.pop %v629
    %v633 = vmul.f32 1.0, %v632
    %v636 = vrot.slane %v522, 7
    %v637 = vrot.slane %v523, 7
    %v640 = vadd.f32 %v631, %v636
    %v641 = vadd.f32 %v633, %v637
    %644 = vrot.lane.b32.xlu0 %v631, 64
    %v645 = vpop.permute.xlu0 %644
    %646 = vrot.lane.b32.xlu0 %v633, 64
    %v647 = vpop.permute.xlu0 %646
    %v650 = vmul.f32 %v631, %v645
    %v651 = vmul.f32 %v633, %v647
    %654 = vrot.lane.b32.xlu0 %v650, 32
    %v655 = vpop.permute.xlu0 %654
    %656 = vrot.lane.b32.xlu0 %v651, 32
    %v657 = vpop.permute.xlu0 %656
    %v660 = vadd.f32 %v640, %v655
    %v661 = vadd.f32 %v641, %v657
    %v662 = vtanh.pop %v660
    %v663 = vtanh.pop %v661
    %666 = vrot.lane.b32.xlu0 %v662, 64
    %v667 = vpop.permute.xlu0 %666
    %668 = vrot.lane.b32.xlu0 %v663, 64
    %v669 = vpop.permute.xlu0 %668
    %v672 = vadd.f32 %v631, %v667
    %v673 = vadd.f32 %v633, %v669
    %675 = vrot.lane.b32.xlu0 %v402, 64
    %v676 = vpop.permute.xlu0 %675
    %678 = vrot.lane.b32.xlu0 %v540, 96
    %v679 = vpop.permute.xlu0 %678
    %v683 = vrot.slane %v672, 3
    %v684 = vrot.slane %v673, 2
    %v685 = vsel %vm265, %v684, %v683
    %v687 = vsel %vm136, %v268, %v676
    %vm688 = vcmask 523264
    %v689 = vsel %vm688, %v687, %v679
    %vm690 = vcmask 785408
    %v691 = vsel %vm690, %v689, %v685
    %692 = vst [vmem:[#allocation5] sm:$0x3] %v691
    %693 = vrot.lane.b32.xlu0 %v685, 32
    %v694 = vpop.permute.xlu0 %693
    %v695 = vsel %vm136, %v694, 0
    %697 = vmatprep.subr.mxu0 0.0
    %698 = vmatpush1.msra.mxu0 %v39
    %699 = vmatprep.subr.mxu0 0.0
    %700 = vmatpush1.msra.mxu0 %v40
    %701 = vmatprep.subr.mxu0 0.0
    %702 = vmatpush1.msra.mxu0 %v41
    %703 = vmatprep.subr.mxu0 0.0
    %704 = vmatpush1.msra.mxu0 %v42
    %705 = vmatprep.subr.mxu0 0.0
    %706 = vmatpush1.msra.mxu0 0.0
    %707 = vmatprep.subr.mxu0 0.0
    %708 = vmatpush1.msra.mxu0 0.0
    %709 = vmatprep.subr.mxu0 0.0
    %710 = vmatpush1.msra.mxu0 0.0
    %711 = vmatprep.subr.mxu0 0.0
    %712 = vmatpush1.msra.mxu0 0.0
    %713 = vmatprep.subr.mxu0 0.0
    %714 = vmatpush1.msra.mxu0 0.0
    %715 = vmatprep.subr.mxu0 0.0
    %716 = vmatpush1.msra.mxu0 0.0
    %717 = vmatprep.subr.mxu0 0.0
    %718 = vmatpush1.msra.mxu0 0.0
    %719 = vmatprep.subr.mxu0 0.0
    %720 = vmatpush1.msra.mxu0 0.0
    %721 = vmatprep.subr.mxu0 0.0
    %722 = vmatpush1.msra.mxu0 0.0
    %723 = vmatprep.subr.mxu0 0.0
    %724 = vmatpush1.msra.mxu0 0.0
    %725 = vmatprep.subr.mxu0 0.0
    %726 = vmatpush1.msra.mxu0 0.0
    %727 = vmatprep.subr.mxu0 0.0
    %728 = vmatpush1.msra.mxu0 0.0
    %729 = vmatprep.subr.mxu0 0.0
    %730 = vmatpush1.msra.mxu0 0.0
    %731 = vmatprep.subr.mxu0 0.0
    %732 = vmatpush1.msra.mxu0 0.0
    %733 = vmatprep.subr.mxu0 0.0
    %734 = vmatpush1.msra.mxu0 0.0
    %735 = vmatprep.subr.mxu0 0.0
    %736 = vmatpush1.msra.mxu0 0.0
    %737 = vmatprep.subr.mxu0 0.0
    %738 = vmatpush1.msra.mxu0 0.0
    %739 = vmatprep.subr.mxu0 0.0
    %740 = vmatpush1.msra.mxu0 0.0
    %741 = vmatprep.subr.mxu0 0.0
    %742 = vmatpush1.msra.mxu0 0.0
    %743 = vmatprep.subr.mxu0 0.0
    %744 = vmatpush1.msra.mxu0 0.0
    %745 = vmatprep.subr.mxu0 0.0
    %746 = vmatpush1.msra.mxu0 0.0
    %747 = vmatprep.subr.mxu0 0.0
    %748 = vmatpush1.msra.mxu0 0.0
    %749 = vmatprep.subr.mxu0 0.0
    %750 = vmatpush1.msra.mxu0 0.0
    %751 = vmatprep.subr.mxu0 0.0
    %752 = vmatpush1.msra.mxu0 0.0
    %753 = vmatprep.subr.mxu0 0.0
    %754 = vmatpush1.msra.mxu0 0.0
    %755 = vmatprep.subr.mxu0 0.0
    %756 = vmatpush1.msra.mxu0 0.0
    %757 = vmatprep.subr.mxu0 0.0
    %758 = vmatpush1.msra.mxu0 0.0
    %759 = vmatprep.subr.mxu0 0.0
    %760 = vmatpush1.msra.mxu0 0.0
    %761 = vmatprep.mubr.f32.mxu0 0.0
    %762 = vmatmul.mubr.f32.gmra.mrb[0].mxu0 %v695
    %v763 = vpop.f32.mrb[0].mxu0
    %v764 = vadd.f32 0.0, %v763
    %v765 = vpop.f32.mrb[0].mxu0
    %766 = vdwg.mxu0
    %v768 = vrot.slane %v764, 4
    %v769 = vrot.slane %v764, 5
    %v772 = vadd.f32 %v128, %v768
    %v773 = vadd.f32 %v133, %v769
    %v774 = vxor.u32 %v772, 2147483648
    %v775 = vxor.u32 %v773, 2147483648
    %v776 = vmul.f32 %v774, 1.442695
    %v777 = vpow.pop %v776
    %v778 = vmul.f32 %v775, 1.442695
    %v779 = vpow.pop %v778
    %v780 = vadd.f32 %v777, 1.0
    %v781 = vadd.f32 %v779, 1.0
    %v782 = vrcp.pop %v780
    %v783 = vmul.f32 1.0, %v782
    %v784 = vrcp.pop %v781
    %v785 = vmul.f32 1.0, %v784
    %v788 = vrot.slane %v660, 7
    %v789 = vrot.slane %v661, 7
    %v792 = vadd.f32 %v783, %v788
    %v793 = vadd.f32 %v785, %v789
    %796 = vrot.lane.b32.xlu0 %v783, 64
    %v797 = vpop.permute.xlu0 %796
    %798 = vrot.lane.b32.xlu0 %v785, 64
    %v799 = vpop.permute.xlu0 %798
    %v802 = vmul.f32 %v783, %v797
    %v803 = vmul.f32 %v785, %v799
    %806 = vrot.lane.b32.xlu0 %v802, 32
    %v807 = vpop.permute.xlu0 %806
    %808 = vrot.lane.b32.xlu0 %v803, 32
    %v809 = vpop.permute.xlu0 %808
    %v812 = vadd.f32 %v792, %v807
    %v813 = vadd.f32 %v793, %v809
    %v814 = vtanh.pop %v812
    %v815 = vtanh.pop %v813
    %818 = vrot.lane.b32.xlu0 %v814, 64
    %v819 = vpop.permute.xlu0 %818
    %820 = vrot.lane.b32.xlu0 %v815, 64
    %v821 = vpop.permute.xlu0 %820
    %v824 = vadd.f32 %v783, %v819
    %v825 = vadd.f32 %v785, %v821
    %v828 = vrot.slane %v824, 4
    %v829 = vrot.slane %v825, 3
    %v830 = vsel %vm265, %v829, %v828
    %831 = vrot.lane.b32.xlu0 %v830, 32
    %v832 = vpop.permute.xlu0 %831
    %v833 = vsel %vm136, %v832, 0
    %835 = vmatprep.subr.mxu0 0.0
    %836 = vmatpush1.msra.mxu0 %v39
    %837 = vmatprep.subr.mxu0 0.0
    %838 = vmatpush1.msra.mxu0 %v40
    %839 = vmatprep.subr.mxu0 0.0
    %840 = vmatpush1.msra.mxu0 %v41
    %841 = vmatprep.subr.mxu0 0.0
    %842 = vmatpush1.msra.mxu0 %v42
    %843 = vmatprep.subr.mxu0 0.0
    %844 = vmatpush1.msra.mxu0 0.0
    %845 = vmatprep.subr.mxu0 0.0
    %846 = vmatpush1.msra.mxu0 0.0
    %847 = vmatprep.subr.mxu0 0.0
    %848 = vmatpush1.msra.mxu0 0.0
    %849 = vmatprep.subr.mxu0 0.0
    %850 = vmatpush1.msra.mxu0 0.0
    %851 = vmatprep.subr.mxu0 0.0
    %852 = vmatpush1.msra.mxu0 0.0
    %853 = vmatprep.subr.mxu0 0.0
    %854 = vmatpush1.msra.mxu0 0.0
    %855 = vmatprep.subr.mxu0 0.0
    %856 = vmatpush1.msra.mxu0 0.0
    %857 = vmatprep.subr.mxu0 0.0
    %858 = vmatpush1.msra.mxu0 0.0
    %859 = vmatprep.subr.mxu0 0.0
    %860 = vmatpush1.msra.mxu0 0.0
    %861 = vmatprep.subr.mxu0 0.0
    %862 = vmatpush1.msra.mxu0 0.0
    %863 = vmatprep.subr.mxu0 0.0
    %864 = vmatpush1.msra.mxu0 0.0
    %865 = vmatprep.subr.mxu0 0.0
    %866 = vmatpush1.msra.mxu0 0.0
    %867 = vmatprep.subr.mxu0 0.0
    %868 = vmatpush1.msra.mxu0 0.0
    %869 = vmatprep.subr.mxu0 0.0
    %870 = vmatpush1.msra.mxu0 0.0
    %871 = vmatprep.subr.mxu0 0.0
    %872 = vmatpush1.msra.mxu0 0.0
    %873 = vmatprep.subr.mxu0 0.0
    %874 = vmatpush1.msra.mxu0 0.0
    %875 = vmatprep.subr.mxu0 0.0
    %876 = vmatpush1.msra.mxu0 0.0
    %877 = vmatprep.subr.mxu0 0.0
    %878 = vmatpush1.msra.mxu0 0.0
    %879 = vmatprep.subr.mxu0 0.0
    %880 = vmatpush1.msra.mxu0 0.0
    %881 = vmatprep.subr.mxu0 0.0
    %882 = vmatpush1.msra.mxu0 0.0
    %883 = vmatprep.subr.mxu0 0.0
    %884 = vmatpush1.msra.mxu0 0.0
    %885 = vmatprep.subr.mxu0 0.0
    %886 = vmatpush1.msra.mxu0 0.0
    %887 = vmatprep.subr.mxu0 0.0
    %888 = vmatpush1.msra.mxu0 0.0
    %889 = vmatprep.subr.mxu0 0.0
    %890 = vmatpush1.msra.mxu0 0.0
    %891 = vmatprep.subr.mxu0 0.0
    %892 = vmatpush1.msra.mxu0 0.0
    %893 = vmatprep.subr.mxu0 0.0
    %894 = vmatpush1.msra.mxu0 0.0
    %895 = vmatprep.subr.mxu0 0.0
    %896 = vmatpush1.msra.mxu0 0.0
    %897 = vmatprep.subr.mxu0 0.0
    %898 = vmatpush1.msra.mxu0 0.0
    %899 = vmatprep.mubr.f32.mxu0 0.0
    %900 = vmatmul.mubr.f32.gmra.mrb[0].mxu0 %v833
    %v901 = vpop.f32.mrb[0].mxu0
    %v902 = vadd.f32 0.0, %v901
    %v903 = vpop.f32.mrb[0].mxu0
    %904 = vdwg.mxu0
    %v906 = vrot.slane %v902, 3
    %v907 = vrot.slane %v902, 4
    %v910 = vadd.f32 %v128, %v906
    %v911 = vadd.f32 %v133, %v907
    %v912 = vxor.u32 %v910, 2147483648
    %v913 = vxor.u32 %v911, 2147483648
    %v914 = vmul.f32 %v912, 1.442695
    %v915 = vpow.pop %v914
    %v916 = vmul.f32 %v913, 1.442695
    %v917 = vpow.pop %v916
    %v918 = vadd.f32 %v915, 1.0
    %v919 = vadd.f32 %v917, 1.0
    %v920 = vrcp.pop %v918
    %v921 = vmul.f32 1.0, %v920
    %v922 = vrcp.pop %v919
    %v923 = vmul.f32 1.0, %v922
    %v926 = vrot.slane %v812, 7
    %v927 = vrot.slane %v813, 7
    %v930 = vadd.f32 %v921, %v926
    %v931 = vadd.f32 %v923, %v927
    %934 = vrot.lane.b32.xlu0 %v921, 64
    %v935 = vpop.permute.xlu0 %934
    %936 = vrot.lane.b32.xlu0 %v923, 64
    %v937 = vpop.permute.xlu0 %936
    %v940 = vmul.f32 %v921, %v935
    %v941 = vmul.f32 %v923, %v937
    %944 = vrot.lane.b32.xlu0 %v940, 32
    %v945 = vpop.permute.xlu0 %944
    %946 = vrot.lane.b32.xlu0 %v941, 32
    %v947 = vpop.permute.xlu0 %946
    %v950 = vadd.f32 %v930, %v945
    %v951 = vadd.f32 %v931, %v947
    %v952 = vtanh.pop %v950
    %v953 = vtanh.pop %v951
    %956 = vrot.lane.b32.xlu0 %v952, 64
    %v957 = vpop.permute.xlu0 %956
    %958 = vrot.lane.b32.xlu0 %v953, 64
    %v959 = vpop.permute.xlu0 %958
    %v962 = vadd.f32 %v921, %v957
    %v963 = vadd.f32 %v923, %v959
    %v966 = vrot.slane %v962, 5
    %v967 = vrot.slane %v963, 4
    %v968 = vsel %vm265, %v967, %v966
    %969 = vrot.lane.b32.xlu0 %v968, 32
    %v970 = vpop.permute.xlu0 %969
    %v971 = vsel %vm136, %v970, 0
    %973 = vmatprep.subr.mxu0 0.0
    %974 = vmatpush1.msra.mxu0 %v39
    %975 = vmatprep.subr.mxu0 0.0
    %976 = vmatpush1.msra.mxu0 %v40
    %977 = vmatprep.subr.mxu0 0.0
    %978 = vmatpush1.msra.mxu0 %v41
    %979 = vmatprep.subr.mxu0 0.0
    %980 = vmatpush1.msra.mxu0 %v42
    %981 = vmatprep.subr.mxu0 0.0
    %982 = vmatpush1.msra.mxu0 0.0
    %983 = vmatprep.subr.mxu0 0.0
    %984 = vmatpush1.msra.mxu0 0.0
    %985 = vmatprep.subr.mxu0 0.0
    %986 = vmatpush1.msra.mxu0 0.0
    %987 = vmatprep.subr.mxu0 0.0
    %988 = vmatpush1.msra.mxu0 0.0
    %989 = vmatprep.subr.mxu0 0.0
    %990 = vmatpush1.msra.mxu0 0.0
    %991 = vmatprep.subr.mxu0 0.0
    %992 = vmatpush1.msra.mxu0 0.0
    %993 = vmatprep.subr.mxu0 0.0
    %994 = vmatpush1.msra.mxu0 0.0
    %995 = vmatprep.subr.mxu0 0.0
    %996 = vmatpush1.msra.mxu0 0.0
    %997 = vmatprep.subr.mxu0 0.0
    %998 = vmatpush1.msra.mxu0 0.0
    %999 = vmatprep.subr.mxu0 0.0
    %1000 = vmatpush1.msra.mxu0 0.0
    %1001 = vmatprep.subr.mxu0 0.0
    %1002 = vmatpush1.msra.mxu0 0.0
    %1003 = vmatprep.subr.mxu0 0.0
    %1004 = vmatpush1.msra.mxu0 0.0
    %1005 = vmatprep.subr.mxu0 0.0
    %1006 = vmatpush1.msra.mxu0 0.0
    %1007 = vmatprep.subr.mxu0 0.0
    %1008 = vmatpush1.msra.mxu0 0.0
    %1009 = vmatprep.subr.mxu0 0.0
    %1010 = vmatpush1.msra.mxu0 0.0
    %1011 = vmatprep.subr.mxu0 0.0
    %1012 = vmatpush1.msra.mxu0 0.0
    %1013 = vmatprep.subr.mxu0 0.0
    %1014 = vmatpush1.msra.mxu0 0.0
    %1015 = vmatprep.subr.mxu0 0.0
    %1016 = vmatpush1.msra.mxu0 0.0
    %1017 = vmatprep.subr.mxu0 0.0
    %1018 = vmatpush1.msra.mxu0 0.0
    %1019 = vmatprep.subr.mxu0 0.0
    %1020 = vmatpush1.msra.mxu0 0.0
    %1021 = vmatprep.subr.mxu0 0.0
    %1022 = vmatpush1.msra.mxu0 0.0
    %1023 = vmatprep.subr.mxu0 0.0
    %1024 = vmatpush1.msra.mxu0 0.0
    %1025 = vmatprep.subr.mxu0 0.0
    %1026 = vmatpush1.msra.mxu0 0.0
    %1027 = vmatprep.subr.mxu0 0.0
    %1028 = vmatpush1.msra.mxu0 0.0
    %1029 = vmatprep.subr.mxu0 0.0
    %1030 = vmatpush1.msra.mxu0 0.0
    %1031 = vmatprep.subr.mxu0 0.0
    %1032 = vmatpush1.msra.mxu0 0.0
    %1033 = vmatprep.subr.mxu0 0.0
    %1034 = vmatpush1.msra.mxu0 0.0
    %1035 = vmatprep.subr.mxu0 0.0
    %1036 = vmatpush1.msra.mxu0 0.0
    %1037 = vmatprep.mubr.f32.mxu0 0.0
    %1038 = vmatmul.mubr.f32.gmra.mrb[0].mxu0 %v971
    %v1039 = vpop.f32.mrb[0].mxu0
    %v1040 = vadd.f32 0.0, %v1039
    %v1041 = vpop.f32.mrb[0].mxu0
    %1042 = vdwg.mxu0
    %v1044 = vrot.slane %v1040, 2
    %v1045 = vrot.slane %v1040, 3
    %v1048 = vadd.f32 %v128, %v1044
    %v1049 = vadd.f32 %v133, %v1045
    %v1050 = vxor.u32 %v1048, 2147483648
    %v1051 = vxor.u32 %v1049, 2147483648
    %v1052 = vmul.f32 %v1050, 1.442695
    %v1053 = vpow.pop %v1052
    %v1054 = vmul.f32 %v1051, 1.442695
    %v1055 = vpow.pop %v1054
    %v1056 = vadd.f32 %v1053, 1.0
    %v1057 = vadd.f32 %v1055, 1.0
    %v1058 = vrcp.pop %v1056
    %v1059 = vmul.f32 1.0, %v1058
    %v1060 = vrcp.pop %v1057
    %v1061 = vmul.f32 1.0, %v1060
    %v1064 = vrot.slane %v950, 7
    %v1065 = vrot.slane %v951, 7
    %v1068 = vadd.f32 %v1059, %v1064
    %v1069 = vadd.f32 %v1061, %v1065
    %1072 = vrot.lane.b32.xlu0 %v1059, 64
    %v1073 = vpop.permute.xlu0 %1072
    %1074 = vrot.lane.b32.xlu0 %v1061, 64
    %v1075 = vpop.permute.xlu0 %1074
    %v1078 = vmul.f32 %v1059, %v1073
    %v1079 = vmul.f32 %v1061, %v1075
    %1082 = vrot.lane.b32.xlu0 %v1078, 32
    %v1083 = vpop.permute.xlu0 %1082
    %1084 = vrot.lane.b32.xlu0 %v1079, 32
    %v1085 = vpop.permute.xlu0 %1084
    %v1088 = vadd.f32 %v1068, %v1083
    %v1089 = vadd.f32 %v1069, %v1085
    %v1090 = vtanh.pop %v1088
    %v1091 = vtanh.pop %v1089
    %1094 = vrot.lane.b32.xlu0 %v1090, 64
    %v1095 = vpop.permute.xlu0 %1094
    %1096 = vrot.lane.b32.xlu0 %v1091, 64
    %v1097 = vpop.permute.xlu0 %1096
    %v1100 = vadd.f32 %v1059, %v1095
    %v1101 = vadd.f32 %v1061, %v1097
    %v1104 = vrot.slane %v1100, 6
    %v1105 = vrot.slane %v1101, 5
    %v1106 = vsel %vm265, %v1105, %v1104
    %1107 = vrot.lane.b32.xlu0 %v1106, 32
    %v1108 = vpop.permute.xlu0 %1107
    %v1109 = vsel %vm136, %v1108, 0
    %1111 = vmatprep.subr.mxu0 0.0
    %1112 = vmatpush1.msra.mxu0 %v39
    %1113 = vmatprep.subr.mxu0 0.0
    %1114 = vmatpush1.msra.mxu0 %v40
    %1115 = vmatprep.subr.mxu0 0.0
    %1116 = vmatpush1.msra.mxu0 %v41
    %1117 = vmatprep.subr.mxu0 0.0
    %1118 = vmatpush1.msra.mxu0 %v42
    %1119 = vmatprep.subr.mxu0 0.0
    %1120 = vmatpush1.msra.mxu0 0.0
    %1121 = vmatprep.subr.mxu0 0.0
    %1122 = vmatpush1.msra.mxu0 0.0
    %1123 = vmatprep.subr.mxu0 0.0
    %1124 = vmatpush1.msra.mxu0 0.0
    %1125 = vmatprep.subr.mxu0 0.0
    %1126 = vmatpush1.msra.mxu0 0.0
    %1127 = vmatprep.subr.mxu0 0.0
    %1128 = vmatpush1.msra.mxu0 0.0
    %1129 = vmatprep.subr.mxu0 0.0
    %1130 = vmatpush1.msra.mxu0 0.0
    %1131 = vmatprep.subr.mxu0 0.0
    %1132 = vmatpush1.msra.mxu0 0.0
    %1133 = vmatprep.subr.mxu0 0.0
    %1134 = vmatpush1.msra.mxu0 0.0
    %1135 = vmatprep.subr.mxu0 0.0
    %1136 = vmatpush1.msra.mxu0 0.0
    %1137 = vmatprep.subr.mxu0 0.0
    %1138 = vmatpush1.msra.mxu0 0.0
    %1139 = vmatprep.subr.mxu0 0.0
    %1140 = vmatpush1.msra.mxu0 0.0
    %1141 = vmatprep.subr.mxu0 0.0
    %1142 = vmatpush1.msra.mxu0 0.0
    %1143 = vmatprep.subr.mxu0 0.0
    %1144 = vmatpush1.msra.mxu0 0.0
    %1145 = vmatprep.subr.mxu0 0.0
    %1146 = vmatpush1.msra.mxu0 0.0
    %1147 = vmatprep.subr.mxu0 0.0
    %1148 = vmatpush1.msra.mxu0 0.0
    %1149 = vmatprep.subr.mxu0 0.0
    %1150 = vmatpush1.msra.mxu0 0.0
    %1151 = vmatprep.subr.mxu0 0.0
    %1152 = vmatpush1.msra.mxu0 0.0
    %1153 = vmatprep.subr.mxu0 0.0
    %1154 = vmatpush1.msra.mxu0 0.0
    %1155 = vmatprep.subr.mxu0 0.0
    %1156 = vmatpush1.msra.mxu0 0.0
    %1157 = vmatprep.subr.mxu0 0.0
    %1158 = vmatpush1.msra.mxu0 0.0
    %1159 = vmatprep.subr.mxu0 0.0
    %1160 = vmatpush1.msra.mxu0 0.0
    %1161 = vmatprep.subr.mxu0 0.0
    %1162 = vmatpush1.msra.mxu0 0.0
    %1163 = vmatprep.subr.mxu0 0.0
    %1164 = vmatpush1.msra.mxu0 0.0
    %1165 = vmatprep.subr.mxu0 0.0
    %1166 = vmatpush1.msra.mxu0 0.0
    %1167 = vmatprep.subr.mxu0 0.0
    %1168 = vmatpush1.msra.mxu0 0.0
    %1169 = vmatprep.subr.mxu0 0.0
    %1170 = vmatpush1.msra.mxu0 0.0
    %1171 = vmatprep.subr.mxu0 0.0
    %1172 = vmatpush1.msra.mxu0 0.0
    %1173 = vmatprep.subr.mxu0 0.0
    %1174 = vmatpush1.msra.mxu0 0.0
    %1175 = vmatprep.mubr.f32.mxu0 0.0
    %1176 = vmatmul.mubr.f32.gmra.mrb[0].mxu0 %v1109
    %v1177 = vpop.f32.mrb[0].mxu0
    %v1178 = vadd.f32 0.0, %v1177
    %v1179 = vpop.f32.mrb[0].mxu0
    %1180 = vdwg.mxu0
    %v1182 = vrot.slane %v1178, 1
    %v1183 = vrot.slane %v1178, 2
    %v1186 = vadd.f32 %v128, %v1182
    %v1187 = vadd.f32 %v133, %v1183
    %v1188 = vxor.u32 %v1186, 2147483648
    %v1189 = vxor.u32 %v1187, 2147483648
    %v1190 = vmul.f32 %v1188, 1.442695
    %v1191 = vpow.pop %v1190
    %v1192 = vmul.f32 %v1189, 1.442695
    %v1193 = vpow.pop %v1192
    %v1194 = vadd.f32 %v1191, 1.0
    %v1195 = vadd.f32 %v1193, 1.0
    %v1196 = vrcp.pop %v1194
    %v1197 = vmul.f32 1.0, %v1196
    %v1198 = vrcp.pop %v1195
    %v1199 = vmul.f32 1.0, %v1198
    %v1202 = vrot.slane %v1088, 7
    %v1203 = vrot.slane %v1089, 7
    %v1206 = vadd.f32 %v1197, %v1202
    %v1207 = vadd.f32 %v1199, %v1203
    %1210 = vrot.lane.b32.xlu0 %v1197, 64
    %v1211 = vpop.permute.xlu0 %1210
    %1212 = vrot.lane.b32.xlu0 %v1199, 64
    %v1213 = vpop.permute.xlu0 %1212
    %v1216 = vmul.f32 %v1197, %v1211
    %v1217 = vmul.f32 %v1199, %v1213
    %1220 = vrot.lane.b32.xlu0 %v1216, 32
    %v1221 = vpop.permute.xlu0 %1220
    %1222 = vrot.lane.b32.xlu0 %v1217, 32
    %v1223 = vpop.permute.xlu0 %1222
    %v1226 = vadd.f32 %v1206, %v1221
    %v1227 = vadd.f32 %v1207, %v1223
    %v1228 = vtanh.pop %v1226
    %v1229 = vtanh.pop %v1227
    %1232 = vrot.lane.b32.xlu0 %v1228, 64
    %v1233 = vpop.permute.xlu0 %1232
    %1234 = vrot.lane.b32.xlu0 %v1229, 64
    %v1235 = vpop.permute.xlu0 %1234
    %v1238 = vadd.f32 %v1197, %v1233
    %v1239 = vadd.f32 %v1199, %v1235
    %v1240 = vrot.slane %v825, 7
    %vm1241 = vcmask 1045509
    %v1242 = vsel %vm1241, %v1240, %v824
    %1243 = vrot.lane.b32.xlu0 %v1242, 32
    %v1244 = vpop.permute.xlu0 %1243
    %v1246 = vrot.slane %v962, 1
    %v1247 = vsel %vm1241, %v963, %v1246
    %1248 = vrot.lane.b32.xlu0 %v1247, 64
    %v1249 = vpop.permute.xlu0 %1248
    %v1251 = vrot.slane %v1100, 2
    %v1252 = vrot.slane %v1101, 1
    %v1253 = vsel %vm1241, %v1252, %v1251
    %1254 = vrot.lane.b32.xlu0 %v1253, 96
    %v1255 = vpop.permute.xlu0 %1254
    %v1259 = vrot.slane %v1238, 3
    %v1260 = vrot.slane %v1239, 2
    %v1261 = vsel %vm1241, %v1260, %v1259
    %v1263 = vsel %vm136, %v1244, %v1249
    %v1264 = vsel %vm688, %v1263, %v1255
    %v1265 = vsel %vm690, %v1264, %v1261
    %v1267 = vcombine.high %v1265, %v1265
    %v1269 = vunpack.c.l.s4 1983009808
    %v1270 = vunpack.c.0.s8 %v1269
    %v1271 = vlaneseq
    %v1272 = vshrl.u32 %v1271, 7
    %v1273 = vsub.s32 %v1270, %v1272
    %v1274 = vrot.slane %v1267, %v1273
    %1276 = vst [vmem:[#allocation5 + $0x2] sm:$0x3] %v1274
    %v1277 = vrot.slane %v1239, 7
    %1278 = vrot.lane.b32.xlu0 %v1238, 32
    %v1279 = vpop.permute.xlu0 %1278
    %1280 = vrot.lane.b32.xlu0 %v1277, 32
    %v1281 = vpop.permute.xlu0 %1280
    %vm1284 = vcmask 261127
    %1285 = vst.msk [vmem:[#allocation6 - $0x7] sm:$0x80] %vm1284, %v1279
    %vm1286 = vcmask 253952
    %1287 = vst.msk [vmem:[#allocation6 + $0x1] sm:$0x1] %vm1286, %v1281
    %v1290 = vrot.slane %v1227, 7
    %1291 = vrot.lane.b32.xlu0 %v1226, 96
    %v1292 = vpop.permute.xlu0 %1291
    %1293 = vrot.lane.b32.xlu0 %v1290, 96
    %v1294 = vpop.permute.xlu0 %1293
    %1297 = vst.msk [vmem:[#allocation8 - $0x7] sm:$0x80] %vm1284, %v1292
    %1298 = vst.msk [vmem:[#allocation8 + $0x1] sm:$0x1] %vm1286, %v1294
    // Predicated region
    $region22: #{tpu_custom_call.1} parent=1 // pred_check
      _
    $region23: #{tpu_custom_call.1} parent=1 // pred_check_branch
      %1300 = sbr.rel (0) target = $region25
    $region24: #{tpu_custom_call.1} parent=1 // pred_region
      %s1302 = ssub.s32 64, 64
      %1303 = vsyncadd [#allocation4], %s1302
      %s1305 = sshll.u32 [#allocation5], 4
      %s1306 = int_to_ptr.vmem [resolvable:$true] %s1305
      %1308 = dma.vmem_to_hbm [thread:$0]  %s1306, 64, %s4, [#allocation4]
    $region25: #{tpu_custom_call.1} parent=1 // pred_fallthru
      _
    // Predicated region
    $region26: #{tpu_custom_call.1} parent=1 // pred_check
      _
    $region27: #{tpu_custom_call.1} parent=1 // pred_check_branch
      %1310 = sbr.rel (0) target = $region29
    $region28: #{tpu_custom_call.1} parent=1 // pred_region
      %s1312 = ssub.s32 32, 32
      %1313 = vsyncadd [#allocation7], %s1312
      %s1315 = sshll.u32 [#allocation6], 4
      %s1316 = int_to_ptr.vmem [resolvable:$true] %s1315
      %1318 = dma.vmem_to_hbm [thread:$0]  %s1316, 32, %s5, [#allocation7]
    $region29: #{tpu_custom_call.1} parent=1 // pred_fallthru
      _
    // Predicated region
    $region30: #{tpu_custom_call.1} parent=1 // pred_check
      _
    $region31: #{tpu_custom_call.1} parent=1 // pred_check_branch
      %1320 = sbr.rel (0) target = $region33
    $region32: #{tpu_custom_call.1} parent=1 // pred_region
      %s1322 = ssub.s32 32, 32
      %1323 = vsyncadd [#allocation7], %s1322
      %s1325 = sshll.u32 [#allocation8], 4
      %s1326 = int_to_ptr.vmem [resolvable:$true] %s1325
      %1328 = dma.vmem_to_hbm [thread:$0]  %s1326, 32, %s6, [#allocation7]
    $region33: #{tpu_custom_call.1} parent=1 // pred_fallthru
      _
    // Predicated region
    $region34: #{tpu_custom_call.1} parent=1 // pred_check
      _
    $region35: #{tpu_custom_call.1} parent=1 // pred_check_branch
      %1330 = sbr.rel (0) target = $region37
    $region36: #{tpu_custom_call.1} parent=1 // pred_region
      %1331 = dma.done [#allocation4], 64
    $region37: #{tpu_custom_call.1} parent=1 // pred_fallthru
      _
    // Predicated region
    $region38: #{tpu_custom_call.1} parent=1 // pred_check
      _
    $region39: #{tpu_custom_call.1} parent=1 // pred_check_branch
      %1333 = sbr.rel (0) target = $region41
    $region40: #{tpu_custom_call.1} parent=1 // pred_region
      %1334 = dma.done [#allocation7], 32
    $region41: #{tpu_custom_call.1} parent=1 // pred_fallthru
      _
    // Predicated region
    $region42: #{tpu_custom_call.1} parent=1 // pred_check
      _
    $region43: #{tpu_custom_call.1} parent=1 // pred_check_branch
      %1336 = sbr.rel (0) target = $region45
    $region44: #{tpu_custom_call.1} parent=1 // pred_region
      %1337 = dma.done [#allocation7], 32
    $region45: #{tpu_custom_call.1} parent=1 // pred_fallthru
      _
    %1338 = vsyncpa [#allocation3], 1
    %1339 = vsyncpa [#allocation4], 1
    %1340 = vsyncpa [#allocation7], 1

</llo_original>
